<compile_context>
chip_gen: v7x
topology: tpu7x:2x2x1
jax: 0.10.0
libtpu: 0.0.40
codegen_flags: <defaults>
</compile_context>

<pallas_src>
import jax
import jax.numpy as jnp
from jax.experimental import pallas as pl
from jax.experimental.pallas import tpu as pltpu


def _pairwise_score_kernel(x_i_ref, x_j_ref, a_i_ref, b_j_ref, m_col_ref, m_row_ref,
                           w1c_ref, w2_ref, b2_ref, w3_ref, b3_ref, out_ref):
    x_i = x_i_ref[0]                       # [TI, D] f32  (rows i of this tile)
    x_j = x_j_ref[0]                       # [TJ, D] f32  (chunk of rows j)
    TI, D = x_i.shape
    TJ = x_j.shape[0]
    Hp = w2_ref.shape[0]

    # Cross term of the factored first layer: (x_i * x_j) @ W1c.
    # Fused broadcast-multiply in f32 (exact), one cast to bf16 for the MXU.
    prod = (x_i[:, None, :] * x_j[None, :, :]).reshape(TI * TJ, D)
    cross = jnp.dot(prod.astype(jnp.bfloat16), w1c_ref[...],
                    preferred_element_type=jnp.float32)                       # [TI*TJ, Hp]

    # h1 = relu(cross + (x_i@W1a + b1) + x_j@W1b); the row/column terms were hoisted to
    # the wrapper (computed once per document, not once per grid step), b1 pre-folded.
    h1 = (cross.reshape(TI, TJ, Hp)
          + a_i_ref[0][:, None, :] + b_j_ref[0][None, :, :])
    h1 = jnp.maximum(h1, 0.0).reshape(TI * TJ, Hp).astype(jnp.bfloat16)

    h2 = jnp.dot(h1, w2_ref[...], preferred_element_type=jnp.float32) + b2_ref[...]
    h2 = jnp.maximum(h2, 0.0).astype(jnp.bfloat16)                            # [TI*TJ, Hp]

    # Final Hp->1 layer fused with the sublane->lane move: bf16 operands, one skinny
    # matmul whose non-contracting dim is the flat pair index, so scores land lane-dense.
    s_row = (jnp.dot(w3_ref[...], h2.T, preferred_element_type=jnp.float32)
             + b3_ref[...])                                                   # [1, TI*TJ]

    # Unflatten p = i*TJ + j into a [TI, TJ] tile using static lane slices (vreg-aligned
    # when TJ % 128 == 0) + one sublane concat (no [N,1] degenerate layout).
    tile = jnp.concatenate([s_row[:, i * TJ:(i + 1) * TJ] for i in range(TI)], axis=0)

    # mean(m_i, m_j, s_ij): column + row mention-score broadcasts, no extra HBM pass.
    out_ref[0] = (tile + m_col_ref[0] + m_row_ref[0]) * (1.0 / 3.0)


def pairwise_score(x, mention_scores, params, *, row_tile=8, col_tile=None):
    """x: [B,S,D] f32, mention_scores: [B,S,1] f32 -> [B,S,S] f32."""
    B, S, D = x.shape
    w1, b1, w2, b2, w3, b3 = params
    H0 = w1.shape[1]
    Hp = ((H0 + 127) // 128) * 128          # 150 -> 256: lane-aligned hidden dim

    row_tile = min(row_tile, S)
    if col_tile is None:
        # Lane-dense output stores need col_tile % 128 == 0 (or col_tile == S); cap the
        # per-step pair chunk so activations stay well under VMEM on every generation.
        col_tile = S if S <= 512 else 512
    assert S % row_tile == 0, "document span count must be divisible by row_tile"
    assert S % col_tile == 0, "document span count must be divisible by col_tile"
    assert col_tile == S or col_tile % 128 == 0
    n_it = S // row_tile
    n_jt = S // col_tile

    def pad_cols(a):
        return jnp.pad(a, ((0, 0), (0, Hp - a.shape[1])))

    # Split W1 over the (g_i, g_j, g_i*g_j) concat; zero-pad the hidden dim (exact).
    w1a = pad_cols(w1[:D])                               # f32, used only in the wrapper
    w1b = pad_cols(w1[D:2 * D])                          # f32, used only in the wrapper
    w1c = pad_cols(w1[2 * D:]).astype(jnp.bfloat16)
    b1p = pad_cols(b1).astype(jnp.float32)
    w2p = jnp.pad(w2, ((0, Hp - H0), (0, Hp - H0))).astype(jnp.bfloat16)
    b2p = pad_cols(b2).astype(jnp.float32)
    w3r = pad_cols(w3.T).astype(jnp.bfloat16)            # [1, Hp]
    b3p = b3.astype(jnp.float32)                         # [1, 1]

    # Hoisted per-row linear terms: computed once per document by plain XLA (f32).
    a_full = jnp.einsum('bsd,dh->bsh', x, w1a) + b1p[None]    # [B, S, Hp]  (b1 folded)
    b_full = jnp.einsum('bsd,dh->bsh', x, w1b)                # [B, S, Hp]

    x_f32 = x.astype(jnp.float32)
    m_col = mention_scores.astype(jnp.float32)           # [B, S, 1]
    m_row = jnp.swapaxes(m_col, 1, 2)                    # [B, 1, S]

    # ---- VMEM budget (sets an explicit scoped limit; v5e default is only 16 MiB) ----
    pair = row_tile * col_tile
    blk_bytes = 2 * (                                    # default double-buffered blocks
        (row_tile + col_tile) * D * 4                    # x_i, x_j tiles (f32)
        + (row_tile + col_tile) * Hp * 4                 # a_full, b_full tiles (f32)
        + (row_tile + col_tile) * 4                      # mention-score slivers
        + D * Hp * 2 + Hp * Hp * 2 + Hp * 6 + 4          # W1c, W2, b2, w3, b3
        + pair * 4)                                      # output tile
    act_bytes = pair * (6 * D + 16 * Hp)                 # prod f32+bf16, cross/h1/h2/h2.T
    vmem_limit = int(min(max(2 * (blk_bytes + act_bytes), 32 * 2**20), 64 * 2**20))

    # ---- advisory cost estimate ----
    n_pairs = S * S
    flops = 2 * B * (n_pairs * D * Hp + n_pairs * Hp * Hp + n_pairs * Hp
                     + 2 * S * D * Hp)
    bytes_accessed = (4 * B * S * D * (1 + n_it)
                      + 4 * B * S * Hp * (1 + n_it)
                      + 4 * 2 * B * S
                      + 2 * (w1c.size + w2p.size + w3r.size)
                      + 4 * (b2p.size + b3p.size)
                      + 4 * B * n_pairs)

    const = lambda b, it, jt: (0, 0)

    out = pl.pallas_call(
        _pairwise_score_kernel,
        out_shape=jax.ShapeDtypeStruct((B, S, S), jnp.float32),
        grid_spec=pltpu.PrefetchScalarGridSpec(
            num_scalar_prefetch=0,
            grid=(B, n_it, n_jt),
            in_specs=[
                pl.BlockSpec((1, row_tile, D), lambda b, it, jt: (b, it, 0)),   # x rows i
                pl.BlockSpec((1, col_tile, D), lambda b, it, jt: (b, jt, 0)),   # x rows j
                pl.BlockSpec((1, row_tile, Hp), lambda b, it, jt: (b, it, 0)),  # a_full
                pl.BlockSpec((1, col_tile, Hp), lambda b, it, jt: (b, jt, 0)),  # b_full
                pl.BlockSpec((1, row_tile, 1), lambda b, it, jt: (b, it, 0)),   # m_i col
                pl.BlockSpec((1, 1, col_tile), lambda b, it, jt: (b, 0, jt)),   # m_j row
                pl.BlockSpec((D, Hp), const),                                   # W1c
                pl.BlockSpec((Hp, Hp), const),                                  # W2
                pl.BlockSpec((1, Hp), const),                                   # b2
                pl.BlockSpec((1, Hp), const),                                   # w3 (row)
                pl.BlockSpec((1, 1), const),                                    # b3
            ],
            out_specs=pl.BlockSpec((1, row_tile, col_tile),
                                   lambda b, it, jt: (b, it, jt)),
        ),
        compiler_params=pltpu.CompilerParams(
            dimension_semantics=("parallel", "parallel", "arbitrary"),
            vmem_limit_bytes=vmem_limit),
        cost_estimate=pl.CostEstimate(flops=int(flops), transcendentals=0,
                                      bytes_accessed=int(bytes_accessed)),
    )(x_f32, x_f32, a_full, b_full, m_col, m_row, w1c, w2p, b2p, w3r, b3p)

    return out


def pairwise_score_ref(x, mention_scores, params):
    """Pure-JAX f32 reference of the PyTorch forward pass."""
    w1, b1, w2, b2, w3, b3 = params
    B, S, D = x.shape
    xi = jnp.broadcast_to(x[:, :, None, :], (B, S, S, D))
    xj = jnp.broadcast_to(x[:, None, :, :], (B, S, S, D))
    pairs = jnp.concatenate([xi, xj, xi * xj], axis=-1)                 # [B,S,S,3D]
    h = jax.nn.relu(pairs @ w1 + b1[0])
    h = jax.nn.relu(h @ w2 + b2[0])
    s = (h @ w3 + b3[0])[..., 0]                                        # [B,S,S]
    m = mention_scores[..., 0]                                          # [B,S]
    return (m[:, :, None] + m[:, None, :] + s) / 3.0


def init_params(key, gij_dim, hidden_dim=150):
    """Deterministic PyTorch-Linear-style init: U(-1/sqrt(fan_in), 1/sqrt(fan_in))."""
    ks = jax.random.split(key, 6)

    def lin(kw, kb, fan_in, fan_out):
        bound = 1.0 / jnp.sqrt(fan_in)
        w = jax.random.uniform(kw, (fan_in, fan_out), jnp.float32, -bound, bound)
        b = jax.random.uniform(kb, (1, fan_out), jnp.float32, -bound, bound)
        return w, b

    w1, b1 = lin(ks[0], ks[1], gij_dim, hidden_dim)
    w2, b2 = lin(ks[2], ks[3], hidden_dim, hidden_dim)
    w3, b3 = lin(ks[4], ks[5], hidden_dim, 1)
    return (w1, b1, w2, b2, w3, b3)


if __name__ == "__main__":
    B, S, D = 2, 16, 32         # batch, document spans, per-span embed dim
    GIJ_DIM = 3 * D             # pair embedding dim (g_i, g_j, g_i*g_j)
    HIDDEN = 150                # Score() default hidden_dim

    key = jax.random.PRNGKey(0)
    k_x, k_m, k_p = jax.random.split(key, 3)

    x = jax.random.normal(k_x, (B, S, D), dtype=jnp.float32)
    mention_scores = jax.random.normal(k_m, (B, S, 1), dtype=jnp.float32)
    params = init_params(k_p, GIJ_DIM, HIDDEN)

    out = pairwise_score(x, mention_scores, params, row_tile=8)
    out = jax.block_until_ready(out)

    ref = pairwise_score_ref(x, mention_scores, params)
    assert out.shape == (B, S, S), out.shape
    assert jnp.allclose(out, ref, rtol=2e-2, atol=2e-2), (
        float(jnp.max(jnp.abs(out - ref))))

    print("KERNEL_OK")
</pallas_src>

<mosaic_0001>
module attributes {stable_mosaic.version = 11 : i64} {
  func.func @_pairwise_score_kernel(%arg0: i32, %arg1: i32, %arg2: i32, %arg3: memref<1x8x32xf32, #tpu.memory_space<vmem>>, %arg4: memref<1x16x32xf32, #tpu.memory_space<vmem>>, %arg5: memref<1x8x256xf32, #tpu.memory_space<vmem>>, %arg6: memref<1x16x256xf32, #tpu.memory_space<vmem>>, %arg7: memref<1x8x1xf32, #tpu.memory_space<vmem>>, %arg8: memref<1x1x16xf32, #tpu.memory_space<vmem>>, %arg9: memref<32x256xbf16, #tpu.memory_space<vmem>>, %arg10: memref<256x256xbf16, #tpu.memory_space<vmem>>, %arg11: memref<1x256xf32, #tpu.memory_space<vmem>>, %arg12: memref<1x256xbf16, #tpu.memory_space<vmem>>, %arg13: memref<1x1xf32, #tpu.memory_space<vmem>>, %arg14: memref<1x8x16xf32, #tpu.memory_space<vmem>>) attributes {dimension_semantics = [#tpu.dimension_semantics<parallel>, #tpu.dimension_semantics<parallel>, #tpu.dimension_semantics<arbitrary>], iteration_bounds = array<i64: 2, 2, 1>, scalar_prefetch = 0 : i64, scratch_operands = 0 : i64, tpu.core_type = #tpu.core_type<tc>, window_params = [{transform_indices = @transform_0, window_bounds = array<i64: 1, 8, 32>}, {transform_indices = @transform_1, window_bounds = array<i64: 1, 16, 32>}, {transform_indices = @transform_2, window_bounds = array<i64: 1, 8, 256>}, {transform_indices = @transform_3, window_bounds = array<i64: 1, 16, 256>}, {transform_indices = @transform_4, window_bounds = array<i64: 1, 8, 1>}, {transform_indices = @transform_5, window_bounds = array<i64: 1, 1, 16>}, {pipeline_mode = #tpu.pipeline_mode<synchronous>, transform_indices = @transform_6, window_bounds = array<i64: 32, 256>}, {pipeline_mode = #tpu.pipeline_mode<synchronous>, transform_indices = @transform_7, window_bounds = array<i64: 256, 256>}, {pipeline_mode = #tpu.pipeline_mode<synchronous>, transform_indices = @transform_8, window_bounds = array<i64: 1, 256>}, {pipeline_mode = #tpu.pipeline_mode<synchronous>, transform_indices = @transform_9, window_bounds = array<i64: 1, 256>}, {pipeline_mode = #tpu.pipeline_mode<synchronous>, transform_indices = @transform_10, window_bounds = array<i64: 1, 1>}, {transform_indices = @transform_11, window_bounds = array<i64: 1, 8, 16>}]} {
    %c0 = arith.constant 0 : index
    %c0_0 = arith.constant 0 : index
    %c0_1 = arith.constant 0 : index
    %0 = vector.load %arg3[%c0, %c0_0, %c0_1] : memref<1x8x32xf32, #tpu.memory_space<vmem>>, vector<1x8x32xf32>
    %1 = vector.shape_cast %0 : vector<1x8x32xf32> to vector<8x32xf32>
    %c0_2 = arith.constant 0 : index
    %c0_3 = arith.constant 0 : index
    %c0_4 = arith.constant 0 : index
    %2 = vector.load %arg4[%c0_2, %c0_3, %c0_4] : memref<1x16x32xf32, #tpu.memory_space<vmem>>, vector<1x16x32xf32>
    %3 = vector.shape_cast %2 : vector<1x16x32xf32> to vector<16x32xf32>
    %4 = vector.shape_cast %1 : vector<8x32xf32> to vector<8x1x32xf32>
    %5 = vector.shape_cast %3 : vector<16x32xf32> to vector<1x16x32xf32>
    %6 = vector.broadcast %4 : vector<8x1x32xf32> to vector<8x16x32xf32>
    %7 = vector.broadcast %5 : vector<1x16x32xf32> to vector<8x16x32xf32>
    %8 = arith.mulf %6, %7 : vector<8x16x32xf32>
    %9 = vector.shape_cast %8 : vector<8x16x32xf32> to vector<128x32xf32>
    %10 = arith.truncf %9 : vector<128x32xf32> to vector<128x32xbf16>
    %c0_5 = arith.constant 0 : index
    %c0_6 = arith.constant 0 : index
    %11 = vector.load %arg9[%c0_5, %c0_6] : memref<32x256xbf16, #tpu.memory_space<vmem>>, vector<32x256xbf16>
    %cst = arith.constant dense<0.000000e+00> : vector<128x256xf32>
    %12 = tpu.matmul %10, %11, %cst {dimension_numbers = #tpu.dot_dimension_numbers<[1], [0], [0], [1], [0, 0, 1, 1], [], []>} : vector<128x32xbf16>, vector<32x256xbf16>, vector<128x256xf32> -> vector<128x256xf32>
    %13 = vector.shape_cast %12 : vector<128x256xf32> to vector<8x16x256xf32>
    %c0_7 = arith.constant 0 : index
    %c0_8 = arith.constant 0 : index
    %c0_9 = arith.constant 0 : index
    %14 = vector.load %arg5[%c0_7, %c0_8, %c0_9] : memref<1x8x256xf32, #tpu.memory_space<vmem>>, vector<1x8x256xf32>
    %15 = vector.shape_cast %14 : vector<1x8x256xf32> to vector<8x256xf32>
    %16 = vector.shape_cast %15 : vector<8x256xf32> to vector<8x1x256xf32>
    %17 = vector.broadcast %16 : vector<8x1x256xf32> to vector<8x16x256xf32>
    %18 = arith.addf %13, %17 : vector<8x16x256xf32>
    %c0_10 = arith.constant 0 : index
    %c0_11 = arith.constant 0 : index
    %c0_12 = arith.constant 0 : index
    %19 = vector.load %arg6[%c0_10, %c0_11, %c0_12] : memref<1x16x256xf32, #tpu.memory_space<vmem>>, vector<1x16x256xf32>
    %20 = vector.shape_cast %19 : vector<1x16x256xf32> to vector<16x256xf32>
    %21 = vector.shape_cast %20 : vector<16x256xf32> to vector<1x16x256xf32>
    %22 = vector.broadcast %21 : vector<1x16x256xf32> to vector<8x16x256xf32>
    %23 = arith.addf %18, %22 : vector<8x16x256xf32>
    %cst_13 = arith.constant 0.000000e+00 : f32
    %24 = vector.broadcast %cst_13 : f32 to vector<8x16x256xf32>
    %25 = arith.maximumf %23, %24 : vector<8x16x256xf32>
    %26 = vector.shape_cast %25 : vector<8x16x256xf32> to vector<128x256xf32>
    %27 = arith.truncf %26 : vector<128x256xf32> to vector<128x256xbf16>
    %c0_14 = arith.constant 0 : index
    %c0_15 = arith.constant 0 : index
    %28 = vector.load %arg10[%c0_14, %c0_15] : memref<256x256xbf16, #tpu.memory_space<vmem>>, vector<256x256xbf16>
    %cst_16 = arith.constant dense<0.000000e+00> : vector<128x256xf32>
    %29 = tpu.matmul %27, %28, %cst_16 {dimension_numbers = #tpu.dot_dimension_numbers<[1], [0], [0], [1], [0, 0, 1, 1], [], []>} : vector<128x256xbf16>, vector<256x256xbf16>, vector<128x256xf32> -> vector<128x256xf32>
    %c0_17 = arith.constant 0 : index
    %c0_18 = arith.constant 0 : index
    %30 = vector.load %arg11[%c0_17, %c0_18] : memref<1x256xf32, #tpu.memory_space<vmem>>, vector<1x256xf32>
    %31 = vector.broadcast %30 : vector<1x256xf32> to vector<128x256xf32>
    %32 = arith.addf %29, %31 : vector<128x256xf32>
    %cst_19 = arith.constant 0.000000e+00 : f32
    %33 = vector.broadcast %cst_19 : f32 to vector<128x256xf32>
    %34 = arith.maximumf %32, %33 : vector<128x256xf32>
    %35 = arith.truncf %34 : vector<128x256xf32> to vector<128x256xbf16>
    %c0_20 = arith.constant 0 : index
    %c0_21 = arith.constant 0 : index
    %36 = vector.load %arg12[%c0_20, %c0_21] : memref<1x256xbf16, #tpu.memory_space<vmem>>, vector<1x256xbf16>
    %37 = tpu.transpose %35, [1, 0] : vector<128x256xbf16> -> vector<256x128xbf16>
    %cst_22 = arith.constant dense<0.000000e+00> : vector<1x128xf32>
    %38 = tpu.matmul %36, %37, %cst_22 {dimension_numbers = #tpu.dot_dimension_numbers<[1], [0], [0], [1], [0, 0, 1, 1], [], []>} : vector<1x256xbf16>, vector<256x128xbf16>, vector<1x128xf32> -> vector<1x128xf32>
    %c0_23 = arith.constant 0 : index
    %c0_24 = arith.constant 0 : index
    %39 = vector.load %arg13[%c0_23, %c0_24] : memref<1x1xf32, #tpu.memory_space<vmem>>, vector<1x1xf32>
    %40 = vector.broadcast %39 : vector<1x1xf32> to vector<1x128xf32>
    %41 = arith.addf %38, %40 : vector<1x128xf32>
    %42 = vector.extract_strided_slice %41 {offsets = [0, 0], sizes = [1, 16], strides = [1, 1]} : vector<1x128xf32> to vector<1x16xf32>
    %43 = vector.extract_strided_slice %41 {offsets = [0, 16], sizes = [1, 16], strides = [1, 1]} : vector<1x128xf32> to vector<1x16xf32>
    %44 = vector.extract_strided_slice %41 {offsets = [0, 32], sizes = [1, 16], strides = [1, 1]} : vector<1x128xf32> to vector<1x16xf32>
    %45 = vector.extract_strided_slice %41 {offsets = [0, 48], sizes = [1, 16], strides = [1, 1]} : vector<1x128xf32> to vector<1x16xf32>
    %46 = vector.extract_strided_slice %41 {offsets = [0, 64], sizes = [1, 16], strides = [1, 1]} : vector<1x128xf32> to vector<1x16xf32>
    %47 = vector.extract_strided_slice %41 {offsets = [0, 80], sizes = [1, 16], strides = [1, 1]} : vector<1x128xf32> to vector<1x16xf32>
    %48 = vector.extract_strided_slice %41 {offsets = [0, 96], sizes = [1, 16], strides = [1, 1]} : vector<1x128xf32> to vector<1x16xf32>
    %49 = vector.extract_strided_slice %41 {offsets = [0, 112], sizes = [1, 16], strides = [1, 1]} : vector<1x128xf32> to vector<1x16xf32>
    %50 = tpu.concatenate %42, %43, %44, %45, %46, %47, %48, %49 in 0 : vector<1x16xf32>, vector<1x16xf32>, vector<1x16xf32>, vector<1x16xf32>, vector<1x16xf32>, vector<1x16xf32>, vector<1x16xf32>, vector<1x16xf32> -> vector<8x16xf32>
    %c0_25 = arith.constant 0 : index
    %c0_26 = arith.constant 0 : index
    %c0_27 = arith.constant 0 : index
    %51 = vector.load %arg7[%c0_25, %c0_26, %c0_27] : memref<1x8x1xf32, #tpu.memory_space<vmem>>, vector<1x8x1xf32>
    %52 = vector.shape_cast %51 : vector<1x8x1xf32> to vector<8x1xf32>
    %53 = vector.broadcast %52 : vector<8x1xf32> to vector<8x16xf32>
    %54 = arith.addf %50, %53 : vector<8x16xf32>
    %c0_28 = arith.constant 0 : index
    %c0_29 = arith.constant 0 : index
    %c0_30 = arith.constant 0 : index
    %55 = vector.load %arg8[%c0_28, %c0_29, %c0_30] : memref<1x1x16xf32, #tpu.memory_space<vmem>>, vector<1x1x16xf32>
    %56 = vector.shape_cast %55 : vector<1x1x16xf32> to vector<1x16xf32>
    %57 = vector.broadcast %56 : vector<1x16xf32> to vector<8x16xf32>
    %58 = arith.addf %54, %57 : vector<8x16xf32>
    %cst_31 = arith.constant 0.333333343 : f32
    %59 = vector.broadcast %cst_31 : f32 to vector<8x16xf32>
    %60 = arith.mulf %58, %59 : vector<8x16xf32>
    %c0_32 = arith.constant 0 : index
    %c0_33 = arith.constant 0 : index
    %c0_34 = arith.constant 0 : index
    %61 = vector.load %arg14[%c0_32, %c0_33, %c0_34] : memref<1x8x16xf32, #tpu.memory_space<vmem>>, vector<1x8x16xf32>
    %62 = vector.shape_cast %61 : vector<1x8x16xf32> to vector<8x16xf32>
    %63 = vector.shape_cast %60 : vector<8x16xf32> to vector<1x8x16xf32>
    tpu.vector_store %arg14[%c0_32, %c0_33, %c0_34], %63 {strides = array<i32>} : memref<1x8x16xf32, #tpu.memory_space<vmem>>, vector<1x8x16xf32>,
    return
  }
  func.func @transform_0(%arg0: i32, %arg1: i32, %arg2: i32) -> (i32, i32, i32) {
    %c0_i32 = arith.constant 0 : i32
    %c0_i32_0 = arith.constant 0 : i32
    return %arg0, %arg1, %c0_i32 : i32, i32, i32
  }
  func.func @transform_1(%arg0: i32, %arg1: i32, %arg2: i32) -> (i32, i32, i32) {
    %c0_i32 = arith.constant 0 : i32
    %c0_i32_0 = arith.constant 0 : i32
    return %arg0, %arg2, %c0_i32 : i32, i32, i32
  }
  func.func @transform_2(%arg0: i32, %arg1: i32, %arg2: i32) -> (i32, i32, i32) {
    %c0_i32 = arith.constant 0 : i32
    %c0_i32_0 = arith.constant 0 : i32
    return %arg0, %arg1, %c0_i32 : i32, i32, i32
  }
  func.func @transform_3(%arg0: i32, %arg1: i32, %arg2: i32) -> (i32, i32, i32) {
    %c0_i32 = arith.constant 0 : i32
    %c0_i32_0 = arith.constant 0 : i32
    return %arg0, %arg2, %c0_i32 : i32, i32, i32
  }
  func.func @transform_4(%arg0: i32, %arg1: i32, %arg2: i32) -> (i32, i32, i32) {
    %c0_i32 = arith.constant 0 : i32
    %c0_i32_0 = arith.constant 0 : i32
    return %arg0, %arg1, %c0_i32 : i32, i32, i32
  }
  func.func @transform_5(%arg0: i32, %arg1: i32, %arg2: i32) -> (i32, i32, i32) {
    %c0_i32 = arith.constant 0 : i32
    %c0_i32_0 = arith.constant 0 : i32
    return %arg0, %c0_i32, %arg2 : i32, i32, i32
  }
  func.func @transform_6(%arg0: i32, %arg1: i32, %arg2: i32) -> (i32, i32) {
    %c0_i32 = arith.constant 0 : i32
    %c0_i32_0 = arith.constant 0 : i32
    %c0_i32_1 = arith.constant 0 : i32
    return %c0_i32, %c0_i32_0 : i32, i32
  }
  func.func @transform_7(%arg0: i32, %arg1: i32, %arg2: i32) -> (i32, i32) {
    %c0_i32 = arith.constant 0 : i32
    %c0_i32_0 = arith.constant 0 : i32
    %c0_i32_1 = arith.constant 0 : i32
    return %c0_i32, %c0_i32_0 : i32, i32
  }
  func.func @transform_8(%arg0: i32, %arg1: i32, %arg2: i32) -> (i32, i32) {
    %c0_i32 = arith.constant 0 : i32
    %c0_i32_0 = arith.constant 0 : i32
    %c0_i32_1 = arith.constant 0 : i32
    return %c0_i32, %c0_i32_0 : i32, i32
  }
  func.func @transform_9(%arg0: i32, %arg1: i32, %arg2: i32) -> (i32, i32) {
    %c0_i32 = arith.constant 0 : i32
    %c0_i32_0 = arith.constant 0 : i32
    %c0_i32_1 = arith.constant 0 : i32
    return %c0_i32, %c0_i32_0 : i32, i32
  }
  func.func @transform_10(%arg0: i32, %arg1: i32, %arg2: i32) -> (i32, i32) {
    %c0_i32 = arith.constant 0 : i32
    %c0_i32_0 = arith.constant 0 : i32
    %c0_i32_1 = arith.constant 0 : i32
    return %c0_i32, %c0_i32_0 : i32, i32
  }
  func.func @transform_11(%arg0: i32, %arg1: i32, %arg2: i32) -> (i32, i32, i32) {
    %c0_i32 = arith.constant 0 : i32
    return %arg0, %arg1, %arg2 : i32, i32, i32
  }
}

</mosaic_0001>

<llo_original>
// kernel: tpu_custom_call.1
$region0: #{tpu_custom_call.1}
  #allocation0 [shape = 'u32[]', space=smem, size = 0x4, offset = 0x4, fixed_abs, tag = 'smem constant byte address 0x4 - core index']
  #allocation1 [shape = 'u32[144,128]{1,0:T(1,128)}', space=vmem, size = 0x12000, scoped, tag = 'internal scratch']
  #allocation2 [shape = 'f32[1,1]{1,0:T(1,128)S(1)}', space=vmem, size = 0x200, scoped, tag = 'scoped memory for tpu_custom_call.1']
  %s0 = inlined_call_operand.vmem [shape: f32[2,16,32], index: 0, kind: input, shape index: {}]
  %s1 = inlined_call_operand.hbm [shape: f32[2,16,32], index: 1, kind: input, shape index: {}]
  %s2 = inlined_call_operand.hbm [shape: f32[2,16,256], index: 2, kind: input, shape index: {}]
  %s3 = inlined_call_operand.hbm [shape: f32[2,16,256], index: 3, kind: input, shape index: {}]
  %s4 = inlined_call_operand.vmem [shape: f32[2,16,1], index: 4, kind: input, shape index: {}]
  %s5 = inlined_call_operand.vmem [shape: f32[2,1,16], index: 5, kind: input, shape index: {}]
  %s6 = inlined_call_operand.hbm [shape: bf16[32,256], index: 6, kind: input, shape index: {}]
  %s7 = inlined_call_operand.hbm [shape: bf16[256,256], index: 7, kind: input, shape index: {}]
  %s8 = inlined_call_operand.vmem [shape: f32[1,256], index: 8, kind: input, shape index: {}]
  %s9 = inlined_call_operand.vmem [shape: bf16[1,256], index: 9, kind: input, shape index: {}]
  %s10 = inlined_call_operand.<no memory space> [shape: f32[1,1], index: 10, kind: input, shape index: {}]
  %s11 = inlined_call_operand.hbm [shape: f32[2,16,16], index: 11, kind: output, shape index: {}]
  %s12 = sld [smem:[#allocation0]]
  $region97: #{tpu_custom_call.1} parent=0
    _
  %s14 = ssub.s32 1, %s12
  %s15 = scalar_select 0, %s14, %s12
  %v16 = vstv %s10
  %17 = vst [vmem:[#allocation2] sm:$0x1] %v16
  $region1: #{tpu_custom_call.1} parent=0
    #allocation3 [shape = 'u8[16384]{0}', space=vmem, size = 0x4000, scoped, tag = 'input window, operand 1']
    #allocation4 [shape = 's32[2]{0}', space=sflag, size = 0x8, scoped, tag = 'scoped memory for tpu_custom_call.1']
    #allocation5 [shape = 's32[2]{0}', space=sflag, size = 0x8, scoped, tag = 'scoped memory for tpu_custom_call.1']
    #allocation6 [shape = 'u8[16384]{0}', space=vmem, size = 0x4000, scoped, tag = 'input window, operand 2']
    #allocation7 [shape = 's32[2]{0}', space=sflag, size = 0x8, scoped, tag = 'scoped memory for tpu_custom_call.1']
    #allocation8 [shape = 'u8[32768]{0}', space=vmem, size = 0x8000, scoped, tag = 'input window, operand 3']
    #allocation9 [shape = 'u8[16384]{0}', space=vmem, size = 0x4000, scoped, tag = 'input window, operand 6, single buffered']
    #allocation10 [shape = 's32[1]{0}', space=sflag, size = 0x4, scoped, tag = 'scoped memory for tpu_custom_call.1']
    #allocation11 [shape = 'u8[131072]{0}', space=vmem, size = 0x20000, scoped, tag = 'input window, operand 7, single buffered']
    #allocation12 [shape = 'u8[8192]{0}', space=vmem, size = 0x2000, scoped, tag = 'output window, operand 0']
    %18 = vsyncpa [#allocation4], 0
    %s19 = scalar_lea.sflag [#allocation4], 1
    %20 = vsyncpa %s19, 0
    %21 = vsyncpa [#allocation7], 0
    %s22 = scalar_lea.sflag [#allocation7], 1
    %23 = vsyncpa %s22, 0
    %24 = vsyncpa [#allocation10], 0
    %25 = vsyncpa [#allocation5], 0
    %s26 = scalar_lea.sflag [#allocation5], 1
    %27 = vsyncpa %s26, 0
    loop: start=0, step=1, limit=6
    $region2: #{tpu_custom_call.1} parent=1 // loop_pre_header
      _
    $region3: #{tpu_custom_call.1} parent=1 // loop_header
      %s29 = sphi 0, %s33
      %p30 = scmp.ge.s32.totalorder %s29, 6
      %s36 = sphi 0, %s55
      %s37 = sphi 0, %s51
      %s38 = sphi 0, %s47
      %s39 = sphi 0, %s36
      %s40 = sphi 0, %s37
      %s41 = sphi 0, %s38
      %s42 = sphi 0, %s39
      %s43 = sphi 0, %s40
      %s44 = sphi 0, %s41
      %s60 = sphi 0, %s62
      %s63 = sphi 0, %s60
      %s64 = sphi 0, %s63
      %s80 = sphi 0, %s64
      %s88 = sphi 0, %s90
      %s91 = sphi 0, %s88
      %s92 = sphi 0, %s91
      %s108 = sphi 0, %s92
      %s116 = sphi 0, %s118
      %s119 = sphi 0, %s116
      %s120 = sphi 0, %s119
      %s136 = sphi 0, %s120
      %s144 = sphi 0, %s146
      %s147 = sphi 0, %s144
      %s148 = sphi 0, %s147
      %s164 = sphi 0, %s148
      %s172 = sphi 0, %s174
      %s175 = sphi 0, %s172
      %s176 = sphi 0, %s175
      %s192 = sphi 0, %s176
      %s200 = sphi 0, %s202
      %s203 = sphi 0, %s200
      %s204 = sphi 0, %s203
      %s220 = sphi 0, %s204
      %s224 = sphi 0, %s224
      %s226 = sphi 0, %s224
      %s227 = sphi 0, %s226
      %s241 = sphi 0, %s227
      %s245 = sphi 0, %s245
      %s247 = sphi 0, %s245
      %s248 = sphi 0, %s247
      %s262 = sphi 0, %s248
      %s266 = sphi 0, %s266
      %s268 = sphi 0, %s266
      %s269 = sphi 0, %s268
      %s283 = sphi 0, %s269
      %s287 = sphi 0, %s287
      %s289 = sphi 0, %s287
      %s290 = sphi 0, %s289
      %s304 = sphi 0, %s290
      %s308 = sphi 0, %s308
      %s310 = sphi 0, %s308
      %s311 = sphi 0, %s310
      %s325 = sphi 0, %s311
      %s335 = sphi 0, %s337
      %s338 = sphi 0, %s335
      %s339 = sphi 0, %s338
      %s355 = sphi 0, %s339
    $region4: #{tpu_custom_call.1} parent=1 // loop_header_branch
      %32 = sbr.rel (%p30) target = $region8
    $region5: #{tpu_custom_call.1} parent=1 // loop_body
      %s34 = ssub.s32 %s29, 1
      %s35 = ssub.s32 %s29, 2
      %s45 = sadd.s32 1, %s38
      %p46 = scmp.ge.s32.totalorder %s45, 1
      %s47 = scalar_select %p46, 0, %s45
      %s48 = sadd.s32 1, %s37
      %s49 = scalar_select %p46, %s48, %s37
      %p50 = scmp.ge.s32.totalorder %s49, 2
      %s51 = scalar_select %p50, 0, %s49
      %s52 = sadd.s32 1, %s36
      %s53 = scalar_select %p50, %s52, %s36
      %p54 = scmp.ge.s32.totalorder %s53, 2
      %s55 = scalar_select %p54, 0, %s53
      %s56 = ssub.s32 %s36, %s55
      %s57 = ssub.s32 %s37, %s51
      %s58 = sor.u32 %s56, %s57
      %p59 = scmp.eq.s32.totalorder %s58, 0
      %s61 = sadd.s32 %s60, 1
      %s62 = scalar_select %p59, %s60, %s61
      %p65 = pneg %p59
      %p66 = scmp.eq.s32.totalorder %s29, 3
      %p67 = por %p65, %p66
      %p68 = scmp.ne.s32.totalorder %s60, %s63
      %p69 = scmp.eq.s32.totalorder %s29, 0
      %p70 = por %p68, %p69
      %p71 = scmp.ne.s32.totalorder %s60, %s63
      %p72 = scmp.eq.s32.totalorder %s34, 3
      %p73 = por %p71, %p72
      %p74 = scmp.ne.s32.totalorder %s63, %s64
      %p75 = scmp.eq.s32.totalorder %s34, 0
      %p76 = por %p74, %p75
      %p77 = scmp.ne.s32.totalorder %s63, %s64
      %p78 = scmp.eq.s32.totalorder %s35, 3
      %p79 = por %p77, %p78
      %p81 = scmp.ne.s32.totalorder %s64, %s80
      %p82 = scmp.eq.s32.totalorder %s35, 0
      %p83 = por %p81, %p82
      %s84 = ssub.s32 %s36, %s55
      %s85 = ssub.s32 %s38, %s47
      %s86 = sor.u32 %s84, %s85
      %p87 = scmp.eq.s32.totalorder %s86, 0
      %s89 = sadd.s32 %s88, 1
      %s90 = scalar_select %p87, %s88, %s89
      %p93 = pneg %p87
      %p94 = scmp.eq.s32.totalorder %s29, 3
      %p95 = por %p93, %p94
      %p96 = scmp.ne.s32.totalorder %s88, %s91
      %p97 = scmp.eq.s32.totalorder %s29, 0
      %p98 = por %p96, %p97
      %p99 = scmp.ne.s32.totalorder %s88, %s91
      %p100 = scmp.eq.s32.totalorder %s34, 3
      %p101 = por %p99, %p100
      %p102 = scmp.ne.s32.totalorder %s91, %s92
      %p103 = scmp.eq.s32.totalorder %s34, 0
      %p104 = por %p102, %p103
      %p105 = scmp.ne.s32.totalorder %s91, %s92
      %p106 = scmp.eq.s32.totalorder %s35, 3
      %p107 = por %p105, %p106
      %p109 = scmp.ne.s32.totalorder %s92, %s108
      %p110 = scmp.eq.s32.totalorder %s35, 0
      %p111 = por %p109, %p110
      %s112 = ssub.s32 %s36, %s55
      %s113 = ssub.s32 %s37, %s51
      %s114 = sor.u32 %s112, %s113
      %p115 = scmp.eq.s32.totalorder %s114, 0
      %s117 = sadd.s32 %s116, 1
      %s118 = scalar_select %p115, %s116, %s117
      %p121 = pneg %p115
      %p122 = scmp.eq.s32.totalorder %s29, 3
      %p123 = por %p121, %p122
      %p124 = scmp.ne.s32.totalorder %s116, %s119
      %p125 = scmp.eq.s32.totalorder %s29, 0
      %p126 = por %p124, %p125
      %p127 = scmp.ne.s32.totalorder %s116, %s119
      %p128 = scmp.eq.s32.totalorder %s34, 3
      %p129 = por %p127, %p128
      %p130 = scmp.ne.s32.totalorder %s119, %s120
      %p131 = scmp.eq.s32.totalorder %s34, 0
      %p132 = por %p130, %p131
      %p133 = scmp.ne.s32.totalorder %s119, %s120
      %p134 = scmp.eq.s32.totalorder %s35, 3
      %p135 = por %p133, %p134
      %p137 = scmp.ne.s32.totalorder %s120, %s136
      %p138 = scmp.eq.s32.totalorder %s35, 0
      %p139 = por %p137, %p138
      %s140 = ssub.s32 %s36, %s55
      %s141 = ssub.s32 %s38, %s47
      %s142 = sor.u32 %s140, %s141
      %p143 = scmp.eq.s32.totalorder %s142, 0
      %s145 = sadd.s32 %s144, 1
      %s146 = scalar_select %p143, %s144, %s145
      %p149 = pneg %p143
      %p150 = scmp.eq.s32.totalorder %s29, 3
      %p151 = por %p149, %p150
      %p152 = scmp.ne.s32.totalorder %s144, %s147
      %p153 = scmp.eq.s32.totalorder %s29, 0
      %p154 = por %p152, %p153
      %p155 = scmp.ne.s32.totalorder %s144, %s147
      %p156 = scmp.eq.s32.totalorder %s34, 3
      %p157 = por %p155, %p156
      %p158 = scmp.ne.s32.totalorder %s147, %s148
      %p159 = scmp.eq.s32.totalorder %s34, 0
      %p160 = por %p158, %p159
      %p161 = scmp.ne.s32.totalorder %s147, %s148
      %p162 = scmp.eq.s32.totalorder %s35, 3
      %p163 = por %p161, %p162
      %p165 = scmp.ne.s32.totalorder %s148, %s164
      %p166 = scmp.eq.s32.totalorder %s35, 0
      %p167 = por %p165, %p166
      %s168 = ssub.s32 %s36, %s55
      %s169 = ssub.s32 %s37, %s51
      %s170 = sor.u32 %s168, %s169
      %p171 = scmp.eq.s32.totalorder %s170, 0
      %s173 = sadd.s32 %s172, 1
      %s174 = scalar_select %p171, %s172, %s173
      %p177 = pneg %p171
      %p178 = scmp.eq.s32.totalorder %s29, 3
      %p179 = por %p177, %p178
      %p180 = scmp.ne.s32.totalorder %s172, %s175
      %p181 = scmp.eq.s32.totalorder %s29, 0
      %p182 = por %p180, %p181
      %p183 = scmp.ne.s32.totalorder %s172, %s175
      %p184 = scmp.eq.s32.totalorder %s34, 3
      %p185 = por %p183, %p184
      %p186 = scmp.ne.s32.totalorder %s175, %s176
      %p187 = scmp.eq.s32.totalorder %s34, 0
      %p188 = por %p186, %p187
      %p189 = scmp.ne.s32.totalorder %s175, %s176
      %p190 = scmp.eq.s32.totalorder %s35, 3
      %p191 = por %p189, %p190
      %p193 = scmp.ne.s32.totalorder %s176, %s192
      %p194 = scmp.eq.s32.totalorder %s35, 0
      %p195 = por %p193, %p194
      %s196 = ssub.s32 %s36, %s55
      %s197 = ssub.s32 %s38, %s47
      %s198 = sor.u32 %s196, %s197
      %p199 = scmp.eq.s32.totalorder %s198, 0
      %s201 = sadd.s32 %s200, 1
      %s202 = scalar_select %p199, %s200, %s201
      %p205 = pneg %p199
      %p206 = scmp.eq.s32.totalorder %s29, 3
      %p207 = por %p205, %p206
      %p208 = scmp.ne.s32.totalorder %s200, %s203
      %p209 = scmp.eq.s32.totalorder %s29, 0
      %p210 = por %p208, %p209
      %p211 = scmp.ne.s32.totalorder %s200, %s203
      %p212 = scmp.eq.s32.totalorder %s34, 3
      %p213 = por %p211, %p212
      %p214 = scmp.ne.s32.totalorder %s203, %s204
      %p215 = scmp.eq.s32.totalorder %s34, 0
      %p216 = por %p214, %p215
      %p217 = scmp.ne.s32.totalorder %s203, %s204
      %p218 = scmp.eq.s32.totalorder %s35, 3
      %p219 = por %p217, %p218
      %p221 = scmp.ne.s32.totalorder %s204, %s220
      %p222 = scmp.eq.s32.totalorder %s35, 0
      %p223 = por %p221, %p222
      %s225 = sadd.s32 %s224, 1
      %p228 = scmp.eq.s32.totalorder %s29, 3
      %p229 = scmp.ne.s32.totalorder %s224, %s226
      %p230 = scmp.eq.s32.totalorder %s29, 0
      %p231 = por %p229, %p230
      %p232 = scmp.ne.s32.totalorder %s224, %s226
      %p233 = scmp.eq.s32.totalorder %s34, 3
      %p234 = por %p232, %p233
      %p235 = scmp.ne.s32.totalorder %s226, %s227
      %p236 = scmp.eq.s32.totalorder %s34, 0
      %p237 = por %p235, %p236
      %p238 = scmp.ne.s32.totalorder %s226, %s227
      %p239 = scmp.eq.s32.totalorder %s35, 3
      %p240 = por %p238, %p239
      %p242 = scmp.ne.s32.totalorder %s227, %s241
      %p243 = scmp.eq.s32.totalorder %s35, 0
      %p244 = por %p242, %p243
      %s246 = sadd.s32 %s245, 1
      %p249 = scmp.eq.s32.totalorder %s29, 3
      %p250 = scmp.ne.s32.totalorder %s245, %s247
      %p251 = scmp.eq.s32.totalorder %s29, 0
      %p252 = por %p250, %p251
      %p253 = scmp.ne.s32.totalorder %s245, %s247
      %p254 = scmp.eq.s32.totalorder %s34, 3
      %p255 = por %p253, %p254
      %p256 = scmp.ne.s32.totalorder %s247, %s248
      %p257 = scmp.eq.s32.totalorder %s34, 0
      %p258 = por %p256, %p257
      %p259 = scmp.ne.s32.totalorder %s247, %s248
      %p260 = scmp.eq.s32.totalorder %s35, 3
      %p261 = por %p259, %p260
      %p263 = scmp.ne.s32.totalorder %s248, %s262
      %p264 = scmp.eq.s32.totalorder %s35, 0
      %p265 = por %p263, %p264
      %s267 = sadd.s32 %s266, 1
      %p270 = scmp.eq.s32.totalorder %s29, 3
      %p271 = scmp.ne.s32.totalorder %s266, %s268
      %p272 = scmp.eq.s32.totalorder %s29, 0
      %p273 = por %p271, %p272
      %p274 = scmp.ne.s32.totalorder %s266, %s268
      %p275 = scmp.eq.s32.totalorder %s34, 3
      %p276 = por %p274, %p275
      %p277 = scmp.ne.s32.totalorder %s268, %s269
      %p278 = scmp.eq.s32.totalorder %s34, 0
      %p279 = por %p277, %p278
      %p280 = scmp.ne.s32.totalorder %s268, %s269
      %p281 = scmp.eq.s32.totalorder %s35, 3
      %p282 = por %p280, %p281
      %p284 = scmp.ne.s32.totalorder %s269, %s283
      %p285 = scmp.eq.s32.totalorder %s35, 0
      %p286 = por %p284, %p285
      %s288 = sadd.s32 %s287, 1
      %p291 = scmp.eq.s32.totalorder %s29, 3
      %p292 = scmp.ne.s32.totalorder %s287, %s289
      %p293 = scmp.eq.s32.totalorder %s29, 0
      %p294 = por %p292, %p293
      %p295 = scmp.ne.s32.totalorder %s287, %s289
      %p296 = scmp.eq.s32.totalorder %s34, 3
      %p297 = por %p295, %p296
      %p298 = scmp.ne.s32.totalorder %s289, %s290
      %p299 = scmp.eq.s32.totalorder %s34, 0
      %p300 = por %p298, %p299
      %p301 = scmp.ne.s32.totalorder %s289, %s290
      %p302 = scmp.eq.s32.totalorder %s35, 3
      %p303 = por %p301, %p302
      %p305 = scmp.ne.s32.totalorder %s290, %s304
      %p306 = scmp.eq.s32.totalorder %s35, 0
      %p307 = por %p305, %p306
      %s309 = sadd.s32 %s308, 1
      %p312 = scmp.eq.s32.totalorder %s29, 3
      %p313 = scmp.ne.s32.totalorder %s308, %s310
      %p314 = scmp.eq.s32.totalorder %s29, 0
      %p315 = por %p313, %p314
      %p316 = scmp.ne.s32.totalorder %s308, %s310
      %p317 = scmp.eq.s32.totalorder %s34, 3
      %p318 = por %p316, %p317
      %p319 = scmp.ne.s32.totalorder %s310, %s311
      %p320 = scmp.eq.s32.totalorder %s34, 0
      %p321 = por %p319, %p320
      %p322 = scmp.ne.s32.totalorder %s310, %s311
      %p323 = scmp.eq.s32.totalorder %s35, 3
      %p324 = por %p322, %p323
      %p326 = scmp.ne.s32.totalorder %s311, %s325
      %p327 = scmp.eq.s32.totalorder %s35, 0
      %p328 = por %p326, %p327
      %s329 = ssub.s32 %s36, %s55
      %s330 = ssub.s32 %s37, %s51
      %s331 = sor.u32 %s329, %s330
      %s332 = ssub.s32 %s38, %s47
      %s333 = sor.u32 %s331, %s332
      %p334 = scmp.eq.s32.totalorder %s333, 0
      %s336 = sadd.s32 %s335, 1
      %s337 = scalar_select %p334, %s335, %s336
      %p340 = pneg %p334
      %p341 = scmp.eq.s32.totalorder %s29, 3
      %p342 = por %p340, %p341
      %p343 = scmp.ne.s32.totalorder %s335, %s338
      %p344 = scmp.eq.s32.totalorder %s29, 0
      %p345 = por %p343, %p344
      %p346 = scmp.ne.s32.totalorder %s335, %s338
      %p347 = scmp.eq.s32.totalorder %s34, 3
      %p348 = por %p346, %p347
      %p349 = scmp.ne.s32.totalorder %s338, %s339
      %p350 = scmp.eq.s32.totalorder %s34, 0
      %p351 = por %p349, %p350
      %p352 = scmp.ne.s32.totalorder %s338, %s339
      %p353 = scmp.eq.s32.totalorder %s35, 3
      %p354 = por %p352, %p353
      %p356 = scmp.ne.s32.totalorder %s339, %s355
      %p357 = scmp.eq.s32.totalorder %s35, 0
      %p358 = por %p356, %p357
      %p359 = scmp.le.s32.totalorder 1, %s29
      %p360 = scmp.lt.s32.totalorder %s29, 5
      %p361 = pnand %p359, %p360
      %p362 = pneg %p361
      // Predicated region
      $region9: #{tpu_custom_call.1} parent=5 // pred_check
        _
      $region10: #{tpu_custom_call.1} parent=5 // pred_check_branch
        %364 = sbr.rel (%p361) target = $region12
      $region11: #{tpu_custom_call.1} parent=5 // pred_region
        %s365 = ssub.s32 %s29, 1
        // Predicated region
        $region13: #{tpu_custom_call.1} parent=11 // pred_check
          %p366 = pneg %p237
        $region14: #{tpu_custom_call.1} parent=11 // pred_check_branch
          %368 = sbr.rel (%p366) target = $region16
        $region15: #{tpu_custom_call.1} parent=11 // pred_region
          %s370 = ssub.s32 512, 512
          %371 = vsyncadd [#allocation10], %s370
          %s372 = sshll.u32 [#allocation9], 4
          %s373 = int_to_ptr.vmem [resolvable:$true] %s372
          %378 = dma.hbm_to_vmem [thread:$0]  %s6, 512, %s373, [#allocation10], 128, 128, 8
        $region16: #{tpu_custom_call.1} parent=11 // pred_fallthru
          _
        // Predicated region
        $region17: #{tpu_custom_call.1} parent=11 // pred_check
          %p379 = pneg %p258
        $region18: #{tpu_custom_call.1} parent=11 // pred_check_branch
          %381 = sbr.rel (%p379) target = $region20
        $region19: #{tpu_custom_call.1} parent=11 // pred_region
          %s383 = ssub.s32 4096, 4096
          %384 = vsyncadd [#allocation10], %s383
          %s385 = sshll.u32 [#allocation11], 4
          %s386 = int_to_ptr.vmem [resolvable:$true] %s385
          %391 = dma.hbm_to_vmem [thread:$0]  %s7, 4096, %s386, [#allocation10], 128, 128, 8
        $region20: #{tpu_custom_call.1} parent=11 // pred_fallthru
          _
        // Predicated region
        $region21: #{tpu_custom_call.1} parent=11 // pred_check
          %p392 = pneg %p279
        $region22: #{tpu_custom_call.1} parent=11 // pred_check_branch
          %394 = sbr.rel (%p392) target = $region24
        $region23: #{tpu_custom_call.1} parent=11 // pred_region
          _
        $region24: #{tpu_custom_call.1} parent=11 // pred_fallthru
          _
        // Predicated region
        $region25: #{tpu_custom_call.1} parent=11 // pred_check
          %p395 = pneg %p300
        $region26: #{tpu_custom_call.1} parent=11 // pred_check_branch
          %397 = sbr.rel (%p395) target = $region28
        $region27: #{tpu_custom_call.1} parent=11 // pred_region
          _
        $region28: #{tpu_custom_call.1} parent=11 // pred_fallthru
          _
        // Predicated region
        $region29: #{tpu_custom_call.1} parent=11 // pred_check
          %p398 = pneg %p321
        $region30: #{tpu_custom_call.1} parent=11 // pred_check_branch
          %400 = sbr.rel (%p398) target = $region32
        $region31: #{tpu_custom_call.1} parent=11 // pred_region
          _
        $region32: #{tpu_custom_call.1} parent=11 // pred_fallthru
          _
      $region12: #{tpu_custom_call.1} parent=5 // pred_fallthru
        _
      %p401 = scmp.lt.s32.totalorder %s29, 4
      // Predicated region
      $region33: #{tpu_custom_call.1} parent=5 // pred_check
        %p402 = pneg %p401
      $region34: #{tpu_custom_call.1} parent=5 // pred_check_branch
        %404 = sbr.rel (%p402) target = $region36
      $region35: #{tpu_custom_call.1} parent=5 // pred_region
        // Predicated region
        $region37: #{tpu_custom_call.1} parent=35 // pred_check
          %p405 = pneg %p70
        $region38: #{tpu_custom_call.1} parent=35 // pred_check_branch
          %407 = sbr.rel (%p405) target = $region40
        $region39: #{tpu_custom_call.1} parent=35 // pred_region
          %p408 = scmp.lt.s32.totalorder %s36, 1
          %s409 = scalar_select %p408, %s36, 1
          %p410 = scmp.lt.s32.totalorder %s37, 1
          %s411 = scalar_select %p410, %s37, 1
          %s412 = smul.addr %s409, 2
          %s413 = sadd.s32 %s411, %s412
          %s414 = smul.addr %s413, 8
          %s415 = scalar_lea.vmem %s0, %s414
        $region40: #{tpu_custom_call.1} parent=35 // pred_fallthru
          _
        // Predicated region
        $region41: #{tpu_custom_call.1} parent=35 // pred_check
          %p416 = pneg %p98
        $region42: #{tpu_custom_call.1} parent=35 // pred_check_branch
          %418 = sbr.rel (%p416) target = $region44
        $region43: #{tpu_custom_call.1} parent=35 // pred_region
          %s419 = sand.u32 %s88, 1
          %s420 = scalar_lea.sflag [#allocation4], %s419
          %s421 = sand.u32 %s88, 1
          %s422 = smul.addr %s421, 16
          %s423 = scalar_lea.vmem [#allocation3], %s422
          %s424 = smul.u32 2, %s38
          %s426 = ssub.s32 256, 256
          %427 = vsyncadd %s420, %s426
          %s428 = smul.addr %s36, 2
          %s429 = sadd.s32 %s424, %s428
          %s430 = smul.addr %s429, 128
          %s431 = scalar_lea.hbm %s1, %s430
          %s432 = sshll.u32 %s423, 4
          %s433 = int_to_ptr.vmem [resolvable:$true] %s432
          %438 = dma.hbm_to_vmem [thread:$0]  %s431, 256, %s433, %s420, 128, 128, 8
        $region44: #{tpu_custom_call.1} parent=35 // pred_fallthru
          _
        // Predicated region
        $region45: #{tpu_custom_call.1} parent=35 // pred_check
          %p439 = pneg %p126
        $region46: #{tpu_custom_call.1} parent=35 // pred_check_branch
          %441 = sbr.rel (%p439) target = $region48
        $region47: #{tpu_custom_call.1} parent=35 // pred_region
          %s442 = sand.u32 %s29, 1
          %s443 = scalar_lea.sflag [#allocation7], %s442
          %s444 = sand.u32 %s116, 1
          %s445 = smul.addr %s444, 16
          %s446 = scalar_lea.vmem [#allocation6], %s445
          %s448 = ssub.s32 256, 256
          %449 = vsyncadd %s443, %s448
          %s450 = smul.addr %s37, 2
          %s451 = smul.addr %s36, 4
          %s452 = sadd.s32 %s450, %s451
          %s453 = smul.addr %s452, 128
          %s454 = scalar_lea.hbm %s2, %s453
          %s456 = sshll.u32 %s446, 4
          %s457 = int_to_ptr.vmem [resolvable:$true] %s456
          %459 = dma.hbm_to_vmem [thread:$0]  %s454, 256, %s457, %s443
        $region48: #{tpu_custom_call.1} parent=35 // pred_fallthru
          _
        // Predicated region
        $region49: #{tpu_custom_call.1} parent=35 // pred_check
          %p460 = pneg %p154
        $region50: #{tpu_custom_call.1} parent=35 // pred_check_branch
          %462 = sbr.rel (%p460) target = $region52
        $region51: #{tpu_custom_call.1} parent=35 // pred_region
          %s463 = sand.u32 %s29, 1
          %s464 = scalar_lea.sflag [#allocation7], %s463
          %s465 = sand.u32 %s144, 1
          %s466 = smul.addr %s465, 32
          %s467 = scalar_lea.vmem [#allocation8], %s466
          %s468 = smul.u32 2, %s38
          %s470 = ssub.s32 512, 512
          %471 = vsyncadd %s464, %s470
          %s472 = smul.addr %s468, 2
          %s473 = smul.addr %s36, 4
          %s474 = sadd.s32 %s472, %s473
          %s475 = smul.addr %s474, 128
          %s476 = scalar_lea.hbm %s3, %s475
          %s477 = sshll.u32 %s467, 4
          %s478 = int_to_ptr.vmem [resolvable:$true] %s477
          %483 = dma.hbm_to_vmem [thread:$0]  %s476, 512, %s478, %s464, 256, 256, 16
        $region52: #{tpu_custom_call.1} parent=35 // pred_fallthru
          _
        // Predicated region
        $region53: #{tpu_custom_call.1} parent=35 // pred_check
          %p484 = pneg %p182
        $region54: #{tpu_custom_call.1} parent=35 // pred_check_branch
          %486 = sbr.rel (%p484) target = $region56
        $region55: #{tpu_custom_call.1} parent=35 // pred_region
          %p487 = scmp.lt.s32.totalorder %s36, 1
          %s488 = scalar_select %p487, %s36, 1
          %p489 = scmp.lt.s32.totalorder %s37, 1
          %s490 = scalar_select %p489, %s37, 1
          %s491 = smul.addr %s488, 2
          %s492 = sadd.s32 %s490, %s491
          %s493 = smul.addr %s492, 8
          %s494 = scalar_lea.vmem %s4, %s493
        $region56: #{tpu_custom_call.1} parent=35 // pred_fallthru
          _
        // Predicated region
        $region57: #{tpu_custom_call.1} parent=35 // pred_check
          %p495 = pneg %p210
        $region58: #{tpu_custom_call.1} parent=35 // pred_check_branch
          %497 = sbr.rel (%p495) target = $region60
        $region59: #{tpu_custom_call.1} parent=35 // pred_region
          %p498 = scmp.lt.s32.totalorder %s36, 1
          %s499 = scalar_select %p498, %s36, 1
          %p500 = scmp.lt.s32.totalorder %s38, 0
          %s501 = scalar_select %p500, %s38, 0
          %s502 = sadd.s32 %s501, %s499
          %s503 = scalar_lea.vmem %s5, %s502
        $region60: #{tpu_custom_call.1} parent=35 // pred_fallthru
          _
      $region36: #{tpu_custom_call.1} parent=5 // pred_fallthru
        _
      %p504 = scmp.le.s32.totalorder 1, %s29
      %p505 = scmp.lt.s32.totalorder %s29, 5
      %p506 = pnand %p504, %p505
      %p507 = pneg %p506
      // Predicated region
      $region61: #{tpu_custom_call.1} parent=5 // pred_check
        _
      $region62: #{tpu_custom_call.1} parent=5 // pred_check_branch
        %509 = sbr.rel (%p506) target = $region64
      $region63: #{tpu_custom_call.1} parent=5 // pred_region
        %s510 = ssub.s32 %s29, 1
        %s511 = sand.u32 %s91, 1
        %s512 = scalar_lea.sflag [#allocation4], %s511
        %s513 = sand.u32 %s91, 1
        %s514 = smul.addr %s513, 16
        %s515 = scalar_lea.vmem [#allocation3], %s514
        // Predicated region
        $region65: #{tpu_custom_call.1} parent=63 // pred_check
          %p516 = pneg %p104
        $region66: #{tpu_custom_call.1} parent=63 // pred_check_branch
          %518 = sbr.rel (%p516) target = $region68
        $region67: #{tpu_custom_call.1} parent=63 // pred_region
          %519 = dma.done %s512, 256
        $region68: #{tpu_custom_call.1} parent=63 // pred_fallthru
          _
        %s520 = sand.u32 %s34, 1
        %s521 = scalar_lea.sflag [#allocation7], %s520
        %s522 = sand.u32 %s119, 1
        %s523 = smul.addr %s522, 16
        %s524 = scalar_lea.vmem [#allocation6], %s523
        // Predicated region
        $region69: #{tpu_custom_call.1} parent=63 // pred_check
          %p525 = pneg %p132
        $region70: #{tpu_custom_call.1} parent=63 // pred_check_branch
          %527 = sbr.rel (%p525) target = $region72
        $region71: #{tpu_custom_call.1} parent=63 // pred_region
          %528 = dma.done %s521, 256
        $region72: #{tpu_custom_call.1} parent=63 // pred_fallthru
          _
        %s529 = sand.u32 %s34, 1
        %s530 = scalar_lea.sflag [#allocation7], %s529
        %s531 = sand.u32 %s147, 1
        %s532 = smul.addr %s531, 32
        %s533 = scalar_lea.vmem [#allocation8], %s532
        // Predicated region
        $region73: #{tpu_custom_call.1} parent=63 // pred_check
          %p534 = pneg %p160
        $region74: #{tpu_custom_call.1} parent=63 // pred_check_branch
          %536 = sbr.rel (%p534) target = $region76
        $region75: #{tpu_custom_call.1} parent=63 // pred_region
          %537 = dma.done %s530, 512
        $region76: #{tpu_custom_call.1} parent=63 // pred_fallthru
          _
        // Predicated region
        $region77: #{tpu_custom_call.1} parent=63 // pred_check
          %p538 = pneg %p237
        $region78: #{tpu_custom_call.1} parent=63 // pred_check_branch
          %540 = sbr.rel (%p538) target = $region80
        $region79: #{tpu_custom_call.1} parent=63 // pred_region
          %541 = dma.done [#allocation10], 512
        $region80: #{tpu_custom_call.1} parent=63 // pred_fallthru
          _
        // Predicated region
        $region81: #{tpu_custom_call.1} parent=63 // pred_check
          %p542 = pneg %p258
        $region82: #{tpu_custom_call.1} parent=63 // pred_check_branch
          %544 = sbr.rel (%p542) target = $region84
        $region83: #{tpu_custom_call.1} parent=63 // pred_region
          %545 = dma.done [#allocation10], 4096
        $region84: #{tpu_custom_call.1} parent=63 // pred_fallthru
          _
        %p546 = scmp.lt.s32.totalorder %s39, 1
        %s547 = scalar_select %p546, %s39, 1
        %p548 = scmp.lt.s32.totalorder %s40, 1
        %s549 = scalar_select %p548, %s40, 1
        %s550 = smul.addr %s547, 2
        %s551 = sadd.s32 %s549, %s550
        %s552 = smul.addr %s551, 8
        %s553 = scalar_lea.vmem %s0, %s552
        %p554 = pneg %p76
        %p555 = pneg %p73
        %s556 = sand.u32 %s91, 1
        %s557 = scalar_lea.sflag [#allocation4], %s556
        %s558 = sand.u32 %s91, 1
        %s559 = smul.addr %s558, 16
        %s560 = scalar_lea.vmem [#allocation3], %s559
        %p561 = pneg %p104
        %p562 = pneg %p101
        %s563 = sand.u32 %s34, 1
        %s564 = scalar_lea.sflag [#allocation7], %s563
        %s565 = sand.u32 %s119, 1
        %s566 = smul.addr %s565, 16
        %s567 = scalar_lea.vmem [#allocation6], %s566
        %p568 = pneg %p132
        %p569 = pneg %p129
        %s570 = sand.u32 %s34, 1
        %s571 = scalar_lea.sflag [#allocation7], %s570
        %s572 = sand.u32 %s147, 1
        %s573 = smul.addr %s572, 32
        %s574 = scalar_lea.vmem [#allocation8], %s573
        %p575 = pneg %p160
        %p576 = pneg %p157
        %p577 = scmp.lt.s32.totalorder %s39, 1
        %s578 = scalar_select %p577, %s39, 1
        %p579 = scmp.lt.s32.totalorder %s40, 1
        %s580 = scalar_select %p579, %s40, 1
        %s581 = smul.addr %s578, 2
        %s582 = sadd.s32 %s580, %s581
        %s583 = smul.addr %s582, 8
        %s584 = scalar_lea.vmem %s4, %s583
        %p585 = pneg %p188
        %p586 = pneg %p185
        %p587 = scmp.lt.s32.totalorder %s39, 1
        %s588 = scalar_select %p587, %s39, 1
        %p589 = scmp.lt.s32.totalorder %s41, 0
        %s590 = scalar_select %p589, %s41, 0
        %s591 = sadd.s32 %s590, %s588
        %s592 = scalar_lea.vmem %s5, %s591
        %p593 = pneg %p216
        %p594 = pneg %p213
        %p595 = pneg %p237
        %p596 = pneg %p234
        %p597 = pneg %p258
        %p598 = pneg %p255
        %p599 = pneg %p279
        %p600 = pneg %p276
        %p601 = pneg %p300
        %p602 = pneg %p297
        %p603 = pneg %p321
        %p604 = pneg %p318
        %p605 = pneg %p351
        %p606 = pneg %p348
        %s607 = sand.u32 %s338, 1
        %s608 = scalar_lea.sflag [#allocation5], %s607
        %s609 = sand.u32 %s338, 1
        %s610 = smul.addr %s609, 8
        %s611 = scalar_lea.vmem [#allocation12], %s610
        %p612 = scmp.lt.s32.totalorder %s39, 1
        %s613 = scalar_select %p612, %s39, 1
        %p614 = scmp.lt.s32.totalorder %s40, 1
        %s615 = scalar_select %p614, %s40, 1
        %s616 = smul.addr %s613, 2
        %s617 = sadd.s32 %s615, %s616
        %s618 = smul.addr %s617, 8
        %s619 = scalar_lea.vmem %s0, %s618
        %s620 = smul.u32 2, %s41
        %s621 = smul.u32 2, %s41
        %p622 = scmp.lt.s32.totalorder %s39, 1
        %s623 = scalar_select %p622, %s39, 1
        %p624 = scmp.lt.s32.totalorder %s40, 1
        %s625 = scalar_select %p624, %s40, 1
        %s626 = smul.addr %s623, 2
        %s627 = sadd.s32 %s625, %s626
        %s628 = smul.addr %s627, 8
        %s629 = scalar_lea.vmem %s4, %s628
        %p630 = scmp.lt.s32.totalorder %s39, 1
        %s631 = scalar_select %p630, %s39, 1
        %p632 = scmp.lt.s32.totalorder %s41, 0
        %s633 = scalar_select %p632, %s41, 0
        %s634 = sadd.s32 %s633, %s631
        %s635 = scalar_lea.vmem %s5, %s634
        %v637 = vld [vmem:[%s619] sm:$0xff]
        %v638 = vld [vmem:[%s515] sm:$0xff]
        %v639 = vld [vmem:[%s515 + $0x8] sm:$0xff]
        %v641 = vcombine.high %v637, %v637
        %v643 = vunpack.c.l.s4 1966171168
        %v644 = vunpack.c.0.s8 %v643
        %v645 = vlaneseq
        %v646 = vshrl.u32 %v645, 7
        %v647 = vsub.s32 %v644, %v646
        %v648 = vrot.slane %v637, %v647
        %v650 = vunpack.c.l.s4 1966171168
        %v651 = vunpack.c.0.s8 %v650
        %v652 = vlaneseq
        %v653 = vshrl.u32 %v652, 7
        %v654 = vsub.s32 %v651, %v653
        %v655 = vrot.slane %v641, %v654
        %v656 = vcombine.high %v648, %v648
        %v657 = vcombine.high %v655, %v655
        %v659 = vunpack.c.l.s4 1966171168
        %v660 = vunpack.c.0.s8 %v659
        %v661 = vlaneseq
        %v662 = vshrl.u32 %v661, 7
        %v663 = vsub.s32 %v660, %v662
        %v664 = vrot.slane %v648, %v663
        %v666 = vunpack.c.l.s4 1966171168
        %v667 = vunpack.c.0.s8 %v666
        %v668 = vlaneseq
        %v669 = vshrl.u32 %v668, 7
        %v670 = vsub.s32 %v667, %v669
        %v671 = vrot.slane %v655, %v670
        %v673 = vunpack.c.l.s4 1966171168
        %v674 = vunpack.c.0.s8 %v673
        %v675 = vlaneseq
        %v676 = vshrl.u32 %v675, 7
        %v677 = vsub.s32 %v674, %v676
        %v678 = vrot.slane %v656, %v677
        %v680 = vunpack.c.l.s4 1966171168
        %v681 = vunpack.c.0.s8 %v680
        %v682 = vlaneseq
        %v683 = vshrl.u32 %v682, 7
        %v684 = vsub.s32 %v681, %v683
        %v685 = vrot.slane %v657, %v684
        %v686 = vcombine.high %v664, %v664
        %v687 = vcombine.high %v671, %v671
        %v688 = vcombine.high %v678, %v678
        %v689 = vcombine.high %v685, %v685
        %v690 = vlaneseq
        %v691 = vshrl.u32 %v690, 7
        %v692 = vsub.s32 0, %v691
        %v693 = vrot.slane %v664, %v692
        %v694 = vlaneseq
        %v695 = vshrl.u32 %v694, 7
        %v696 = vsub.s32 0, %v695
        %v697 = vrot.slane %v678, %v696
        %v698 = vlaneseq
        %v699 = vshrl.u32 %v698, 7
        %v700 = vsub.s32 0, %v699
        %v701 = vrot.slane %v686, %v700
        %v702 = vlaneseq
        %v703 = vshrl.u32 %v702, 7
        %v704 = vsub.s32 0, %v703
        %v705 = vrot.slane %v688, %v704
        %v706 = vlaneseq
        %v707 = vshrl.u32 %v706, 7
        %v708 = vsub.s32 0, %v707
        %v709 = vrot.slane %v671, %v708
        %v710 = vlaneseq
        %v711 = vshrl.u32 %v710, 7
        %v712 = vsub.s32 0, %v711
        %v713 = vrot.slane %v685, %v712
        %v714 = vlaneseq
        %v715 = vshrl.u32 %v714, 7
        %v716 = vsub.s32 0, %v715
        %v717 = vrot.slane %v687, %v716
        %v718 = vlaneseq
        %v719 = vshrl.u32 %v718, 7
        %v720 = vsub.s32 0, %v719
        %v721 = vrot.slane %v689, %v720
        %v730 = vmul.f32 %v693, %v638
        %v731 = vmul.f32 %v693, %v639
        %v732 = vmul.f32 %v697, %v638
        %v733 = vmul.f32 %v697, %v639
        %v734 = vmul.f32 %v701, %v638
        %v735 = vmul.f32 %v701, %v639
        %v736 = vmul.f32 %v705, %v638
        %v737 = vmul.f32 %v705, %v639
        %v738 = vmul.f32 %v709, %v638
        %v739 = vmul.f32 %v709, %v639
        %v740 = vmul.f32 %v713, %v638
        %v741 = vmul.f32 %v713, %v639
        %v742 = vmul.f32 %v717, %v638
        %v743 = vmul.f32 %v717, %v639
        %v744 = vmul.f32 %v721, %v638
        %v745 = vmul.f32 %v721, %v639
        %v746 = vpack.c.bf16 %v731, %v730
        %v747 = vpack.c.bf16 %v733, %v732
        %v748 = vpack.c.bf16 %v735, %v734
        %v749 = vpack.c.bf16 %v737, %v736
        %v750 = vpack.c.bf16 %v739, %v738
        %v751 = vpack.c.bf16 %v741, %v740
        %v752 = vpack.c.bf16 %v743, %v742
        %v753 = vpack.c.bf16 %v745, %v744
        %v754 = vld [vmem:[#allocation9] sm:$0xff]
        %v755 = vld [vmem:[#allocation9 + $0x8] sm:$0xff]
        %v756 = vld [vmem:[#allocation9 + $0x10] sm:$0xff]
        %v757 = vld [vmem:[#allocation9 + $0x18] sm:$0xff]
        %v762 = vunpack.c.l.b16 %v754
        %v763 = vunpack.c.h.b16 %v754
        %v764 = vunpack.c.l.b16 %v755
        %v765 = vunpack.c.h.b16 %v755
        %v766 = vunpack.c.l.b16 %v756
        %v767 = vunpack.c.h.b16 %v756
        %v768 = vunpack.c.l.b16 %v757
        %v769 = vunpack.c.h.b16 %v757
        %v770 = vpack.c.b16 %v764, %v762
        %v771 = vpack.c.b16 %v765, %v763
        %v772 = vpack.c.b16 %v768, %v766
        %v773 = vpack.c.b16 %v769, %v767
        %vm778 = vcmask 261120
        %v780 = vsel %vm778, %v746, 0
        %v783 = vsel %vm778, %v747, 0
        %v786 = vsel %vm778, %v748, 0
        %v789 = vsel %vm778, %v749, 0
        %v792 = vsel %vm778, %v750, 0
        %v795 = vsel %vm778, %v751, 0
        %v798 = vsel %vm778, %v752, 0
        %v801 = vsel %vm778, %v753, 0
        %803 = vmatprep.subr.bf16.mxu0 %v771
        %804 = vmatpush1.bf16.msra.mxu0 %v770
        %805 = vmatprep.subr.bf16.mxu0 %v773
        %806 = vmatpush1.bf16.msra.mxu0 %v772
        %807 = vmatprep.subr.bf16.mxu0 0
        %808 = vmatpush1.bf16.msra.mxu0 0
        %809 = vmatprep.subr.bf16.mxu0 0
        %810 = vmatpush1.bf16.msra.mxu0 0
        %811 = vmatprep.subr.bf16.mxu0 0
        %812 = vmatpush1.bf16.msra.mxu0 0
        %813 = vmatprep.subr.bf16.mxu0 0
        %814 = vmatpush1.bf16.msra.mxu0 0
        %815 = vmatprep.subr.bf16.mxu0 0
        %816 = vmatpush1.bf16.msra.mxu0 0
        %817 = vmatprep.subr.bf16.mxu0 0
        %818 = vmatpush1.bf16.msra.mxu0 0
        %819 = vmatprep.subr.bf16.mxu0 0
        %820 = vmatpush1.bf16.msra.mxu0 0
        %821 = vmatprep.subr.bf16.mxu0 0
        %822 = vmatpush1.bf16.msra.mxu0 0
        %823 = vmatprep.subr.bf16.mxu0 0
        %824 = vmatpush1.bf16.msra.mxu0 0
        %825 = vmatprep.subr.bf16.mxu0 0
        %826 = vmatpush1.bf16.msra.mxu0 0
        %827 = vmatprep.subr.bf16.mxu0 0
        %828 = vmatpush1.bf16.msra.mxu0 0
        %829 = vmatprep.subr.bf16.mxu0 0
        %830 = vmatpush1.bf16.msra.mxu0 0
        %831 = vmatprep.subr.bf16.mxu0 0
        %832 = vmatpush1.bf16.msra.mxu0 0
        %833 = vmatprep.subr.bf16.mxu0 0
        %834 = vmatpush1.bf16.msra.mxu0 0
        %835 = vmatprep.mubr.bf16.mxu0 0
        %836 = vmatmul.mubr.bf16.gmra.mrb[0].mxu0 %v780
        %v837 = vpop.f32.mrb[0].mxu0
        %v838 = vadd.f32 0.0, %v837
        %v839 = vpop.f32.mrb[0].mxu0
        %v840 = vadd.f32 0.0, %v839
        %v841 = vpop.f32.mrb[0].mxu0
        %v842 = vadd.f32 0.0, %v841
        %v843 = vpop.f32.mrb[0].mxu0
        %v844 = vadd.f32 0.0, %v843
        %845 = vmatprep.mubr.bf16.mxu0 0
        %846 = vmatmul.mubr.bf16.gmra.mrb[0].mxu0 %v783
        %v847 = vpop.f32.mrb[0].mxu0
        %v848 = vadd.f32 0.0, %v847
        %v849 = vpop.f32.mrb[0].mxu0
        %v850 = vadd.f32 0.0, %v849
        %v851 = vpop.f32.mrb[0].mxu0
        %v852 = vadd.f32 0.0, %v851
        %v853 = vpop.f32.mrb[0].mxu0
        %v854 = vadd.f32 0.0, %v853
        %855 = vmatprep.mubr.bf16.mxu0 0
        %856 = vmatmul.mubr.bf16.gmra.mrb[0].mxu0 %v786
        %v857 = vpop.f32.mrb[0].mxu0
        %v858 = vadd.f32 0.0, %v857
        %v859 = vpop.f32.mrb[0].mxu0
        %v860 = vadd.f32 0.0, %v859
        %v861 = vpop.f32.mrb[0].mxu0
        %v862 = vadd.f32 0.0, %v861
        %v863 = vpop.f32.mrb[0].mxu0
        %v864 = vadd.f32 0.0, %v863
        %865 = vmatprep.mubr.bf16.mxu0 0
        %866 = vmatmul.mubr.bf16.gmra.mrb[0].mxu0 %v789
        %v867 = vpop.f32.mrb[0].mxu0
        %v868 = vadd.f32 0.0, %v867
        %v869 = vpop.f32.mrb[0].mxu0
        %v870 = vadd.f32 0.0, %v869
        %v871 = vpop.f32.mrb[0].mxu0
        %v872 = vadd.f32 0.0, %v871
        %v873 = vpop.f32.mrb[0].mxu0
        %v874 = vadd.f32 0.0, %v873
        %875 = vmatprep.mubr.bf16.mxu0 0
        %876 = vmatmul.mubr.bf16.gmra.mrb[0].mxu0 %v792
        %v877 = vpop.f32.mrb[0].mxu0
        %v878 = vadd.f32 0.0, %v877
        %v879 = vpop.f32.mrb[0].mxu0
        %v880 = vadd.f32 0.0, %v879
        %v881 = vpop.f32.mrb[0].mxu0
        %v882 = vadd.f32 0.0, %v881
        %v883 = vpop.f32.mrb[0].mxu0
        %v884 = vadd.f32 0.0, %v883
        %885 = vmatprep.mubr.bf16.mxu0 0
        %886 = vmatmul.mubr.bf16.gmra.mrb[0].mxu0 %v795
        %v887 = vpop.f32.mrb[0].mxu0
        %v888 = vadd.f32 0.0, %v887
        %v889 = vpop.f32.mrb[0].mxu0
        %v890 = vadd.f32 0.0, %v889
        %v891 = vpop.f32.mrb[0].mxu0
        %v892 = vadd.f32 0.0, %v891
        %v893 = vpop.f32.mrb[0].mxu0
        %v894 = vadd.f32 0.0, %v893
        %895 = vmatprep.mubr.bf16.mxu0 0
        %896 = vmatmul.mubr.bf16.gmra.mrb[0].mxu0 %v798
        %v897 = vpop.f32.mrb[0].mxu0
        %v898 = vadd.f32 0.0, %v897
        %v899 = vpop.f32.mrb[0].mxu0
        %v900 = vadd.f32 0.0, %v899
        %v901 = vpop.f32.mrb[0].mxu0
        %v902 = vadd.f32 0.0, %v901
        %v903 = vpop.f32.mrb[0].mxu0
        %v904 = vadd.f32 0.0, %v903
        %905 = vmatprep.mubr.bf16.mxu0 0
        %906 = vmatmul.mubr.bf16.gmra.mrb[0].mxu0 %v801
        %v907 = vpop.f32.mrb[0].mxu0
        %v908 = vadd.f32 0.0, %v907
        %v909 = vpop.f32.mrb[0].mxu0
        %v910 = vadd.f32 0.0, %v909
        %v911 = vpop.f32.mrb[0].mxu0
        %v912 = vadd.f32 0.0, %v911
        %v913 = vpop.f32.mrb[0].mxu0
        %v914 = vadd.f32 0.0, %v913
        %915 = vdwg.mxu0
        %v916 = vld [vmem:[%s524] sm:$0xff]
        %v917 = vld [vmem:[%s524 + $0x8] sm:$0xff]
        %v920 = vcombine.low %v916, %v917
        %v921 = vcombine.high %v916, %v917
        %v923 = vunpack.c.l.s4 1966171168
        %v924 = vunpack.c.0.s8 %v923
        %v925 = vlaneseq
        %v926 = vshrl.u32 %v925, 7
        %v927 = vsub.s32 %v924, %v926
        %v928 = vrot.slane %v920, %v927
        %v930 = vunpack.c.l.s4 1966171168
        %v931 = vunpack.c.0.s8 %v930
        %v932 = vlaneseq
        %v933 = vshrl.u32 %v932, 7
        %v934 = vsub.s32 %v931, %v933
        %v935 = vrot.slane %v921, %v934
        %v936 = vcombine.high %v928, %v928
        %v937 = vcombine.high %v935, %v935
        %v939 = vunpack.c.l.s4 1966171168
        %v940 = vunpack.c.0.s8 %v939
        %v941 = vlaneseq
        %v942 = vshrl.u32 %v941, 7
        %v943 = vsub.s32 %v940, %v942
        %v944 = vrot.slane %v928, %v943
        %v946 = vunpack.c.l.s4 1966171168
        %v947 = vunpack.c.0.s8 %v946
        %v948 = vlaneseq
        %v949 = vshrl.u32 %v948, 7
        %v950 = vsub.s32 %v947, %v949
        %v951 = vrot.slane %v935, %v950
        %v953 = vunpack.c.l.s4 1966171168
        %v954 = vunpack.c.0.s8 %v953
        %v955 = vlaneseq
        %v956 = vshrl.u32 %v955, 7
        %v957 = vsub.s32 %v954, %v956
        %v958 = vrot.slane %v936, %v957
        %v960 = vunpack.c.l.s4 1966171168
        %v961 = vunpack.c.0.s8 %v960
        %v962 = vlaneseq
        %v963 = vshrl.u32 %v962, 7
        %v964 = vsub.s32 %v961, %v963
        %v965 = vrot.slane %v937, %v964
        %v966 = vcombine.high %v944, %v944
        %v967 = vcombine.high %v951, %v951
        %v968 = vcombine.high %v958, %v958
        %v969 = vcombine.high %v965, %v965
        %v970 = vlaneseq
        %v971 = vshrl.u32 %v970, 7
        %v972 = vsub.s32 0, %v971
        %v973 = vrot.slane %v944, %v972
        %v974 = vlaneseq
        %v975 = vshrl.u32 %v974, 7
        %v976 = vsub.s32 1, %v975
        %v977 = vrot.slane %v944, %v976
        %v978 = vlaneseq
        %v979 = vshrl.u32 %v978, 7
        %v980 = vsub.s32 0, %v979
        %v981 = vrot.slane %v958, %v980
        %v982 = vlaneseq
        %v983 = vshrl.u32 %v982, 7
        %v984 = vsub.s32 1, %v983
        %v985 = vrot.slane %v958, %v984
        %v986 = vlaneseq
        %v987 = vshrl.u32 %v986, 7
        %v988 = vsub.s32 0, %v987
        %v989 = vrot.slane %v966, %v988
        %v990 = vlaneseq
        %v991 = vshrl.u32 %v990, 7
        %v992 = vsub.s32 1, %v991
        %v993 = vrot.slane %v966, %v992
        %v994 = vlaneseq
        %v995 = vshrl.u32 %v994, 7
        %v996 = vsub.s32 0, %v995
        %v997 = vrot.slane %v968, %v996
        %v998 = vlaneseq
        %v999 = vshrl.u32 %v998, 7
        %v1000 = vsub.s32 1, %v999
        %v1001 = vrot.slane %v968, %v1000
        %v1002 = vlaneseq
        %v1003 = vshrl.u32 %v1002, 7
        %v1004 = vsub.s32 0, %v1003
        %v1005 = vrot.slane %v951, %v1004
        %v1006 = vlaneseq
        %v1007 = vshrl.u32 %v1006, 7
        %v1008 = vsub.s32 1, %v1007
        %v1009 = vrot.slane %v951, %v1008
        %v1010 = vlaneseq
        %v1011 = vshrl.u32 %v1010, 7
        %v1012 = vsub.s32 0, %v1011
        %v1013 = vrot.slane %v965, %v1012
        %v1014 = vlaneseq
        %v1015 = vshrl.u32 %v1014, 7
        %v1016 = vsub.s32 1, %v1015
        %v1017 = vrot.slane %v965, %v1016
        %v1018 = vlaneseq
        %v1019 = vshrl.u32 %v1018, 7
        %v1020 = vsub.s32 0, %v1019
        %v1021 = vrot.slane %v967, %v1020
        %v1022 = vlaneseq
        %v1023 = vshrl.u32 %v1022, 7
        %v1024 = vsub.s32 1, %v1023
        %v1025 = vrot.slane %v967, %v1024
        %v1026 = vlaneseq
        %v1027 = vshrl.u32 %v1026, 7
        %v1028 = vsub.s32 0, %v1027
        %v1029 = vrot.slane %v969, %v1028
        %v1030 = vlaneseq
        %v1031 = vshrl.u32 %v1030, 7
        %v1032 = vsub.s32 1, %v1031
        %v1033 = vrot.slane %v969, %v1032
        %v1050 = vadd.f32 %v838, %v973
        %v1051 = vadd.f32 %v840, %v977
        %v1052 = vadd.f32 %v842, %v973
        %v1053 = vadd.f32 %v844, %v977
        %v1054 = vadd.f32 %v848, %v981
        %v1055 = vadd.f32 %v850, %v985
        %v1056 = vadd.f32 %v852, %v981
        %v1057 = vadd.f32 %v854, %v985
        %v1058 = vadd.f32 %v858, %v989
        %v1059 = vadd.f32 %v860, %v993
        %v1060 = vadd.f32 %v862, %v989
        %v1061 = vadd.f32 %v864, %v993
        %v1062 = vadd.f32 %v868, %v997
        %v1063 = vadd.f32 %v870, %v1001
        %v1064 = vadd.f32 %v872, %v997
        %v1065 = vadd.f32 %v874, %v1001
        %v1066 = vadd.f32 %v878, %v1005
        %v1067 = vadd.f32 %v880, %v1009
        %v1068 = vadd.f32 %v882, %v1005
        %v1069 = vadd.f32 %v884, %v1009
        %v1070 = vadd.f32 %v888, %v1013
        %v1071 = vadd.f32 %v890, %v1017
        %v1072 = vadd.f32 %v892, %v1013
        %v1073 = vadd.f32 %v894, %v1017
        %v1074 = vadd.f32 %v898, %v1021
        %v1075 = vadd.f32 %v900, %v1025
        %v1076 = vadd.f32 %v902, %v1021
        %v1077 = vadd.f32 %v904, %v1025
        %v1078 = vadd.f32 %v908, %v1029
        %v1079 = vadd.f32 %v910, %v1033
        %v1080 = vadd.f32 %v912, %v1029
        %v1081 = vadd.f32 %v914, %v1033
        %v1082 = vld [vmem:[%s533] sm:$0xff]
        %v1083 = vld [vmem:[%s533 + $0x8] sm:$0xff]
        %v1084 = vld [vmem:[%s533 + $0x10] sm:$0xff]
        %v1085 = vld [vmem:[%s533 + $0x18] sm:$0xff]
        %v1086 = vadd.f32 %v1050, %v1082
        %v1087 = vadd.f32 %v1051, %v1083
        %v1088 = vadd.f32 %v1052, %v1084
        %v1089 = vadd.f32 %v1053, %v1085
        %v1090 = vadd.f32 %v1054, %v1082
        %v1091 = vadd.f32 %v1055, %v1083
        %v1092 = vadd.f32 %v1056, %v1084
        %v1093 = vadd.f32 %v1057, %v1085
        %v1094 = vadd.f32 %v1058, %v1082
        %v1095 = vadd.f32 %v1059, %v1083
        %v1096 = vadd.f32 %v1060, %v1084
        %v1097 = vadd.f32 %v1061, %v1085
        %v1098 = vadd.f32 %v1062, %v1082
        %v1099 = vadd.f32 %v1063, %v1083
        %v1100 = vadd.f32 %v1064, %v1084
        %v1101 = vadd.f32 %v1065, %v1085
        %v1102 = vadd.f32 %v1066, %v1082
        %v1103 = vadd.f32 %v1067, %v1083
        %v1104 = vadd.f32 %v1068, %v1084
        %v1105 = vadd.f32 %v1069, %v1085
        %v1106 = vadd.f32 %v1070, %v1082
        %v1107 = vadd.f32 %v1071, %v1083
        %v1108 = vadd.f32 %v1072, %v1084
        %v1109 = vadd.f32 %v1073, %v1085
        %v1110 = vadd.f32 %v1074, %v1082
        %v1111 = vadd.f32 %v1075, %v1083
        %v1112 = vadd.f32 %v1076, %v1084
        %v1113 = vadd.f32 %v1077, %v1085
        %v1114 = vadd.f32 %v1078, %v1082
        %v1115 = vadd.f32 %v1079, %v1083
        %v1116 = vadd.f32 %v1080, %v1084
        %v1117 = vadd.f32 %v1081, %v1085
        %v1118 = vmax.f32 %v1086, 0.0
        %v1119 = vmax.f32 %v1087, 0.0
        %v1120 = vmax.f32 %v1088, 0.0
        %v1121 = vmax.f32 %v1089, 0.0
        %v1122 = vmax.f32 %v1090, 0.0
        %v1123 = vmax.f32 %v1091, 0.0
        %v1124 = vmax.f32 %v1092, 0.0
        %v1125 = vmax.f32 %v1093, 0.0
        %v1126 = vmax.f32 %v1094, 0.0
        %v1127 = vmax.f32 %v1095, 0.0
        %v1128 = vmax.f32 %v1096, 0.0
        %v1129 = vmax.f32 %v1097, 0.0
        %v1130 = vmax.f32 %v1098, 0.0
        %v1131 = vmax.f32 %v1099, 0.0
        %v1132 = vmax.f32 %v1100, 0.0
        %v1133 = vmax.f32 %v1101, 0.0
        %v1134 = vmax.f32 %v1102, 0.0
        %v1135 = vmax.f32 %v1103, 0.0
        %v1136 = vmax.f32 %v1104, 0.0
        %v1137 = vmax.f32 %v1105, 0.0
        %v1138 = vmax.f32 %v1106, 0.0
        %v1139 = vmax.f32 %v1107, 0.0
        %v1140 = vmax.f32 %v1108, 0.0
        %v1141 = vmax.f32 %v1109, 0.0
        %v1142 = vmax.f32 %v1110, 0.0
        %v1143 = vmax.f32 %v1111, 0.0
        %v1144 = vmax.f32 %v1112, 0.0
        %v1145 = vmax.f32 %v1113, 0.0
        %v1146 = vmax.f32 %v1114, 0.0
        %v1147 = vmax.f32 %v1115, 0.0
        %v1148 = vmax.f32 %v1116, 0.0
        %v1149 = vmax.f32 %v1117, 0.0
        %v1150 = vpack.c.bf16 %v1120, %v1118
        %v1151 = vpack.c.bf16 %v1121, %v1119
        %v1152 = vpack.c.bf16 %v1124, %v1122
        %v1153 = vpack.c.bf16 %v1125, %v1123
        %v1154 = vpack.c.bf16 %v1128, %v1126
        %v1155 = vpack.c.bf16 %v1129, %v1127
        %v1156 = vpack.c.bf16 %v1132, %v1130
        %v1157 = vpack.c.bf16 %v1133, %v1131
        %v1158 = vpack.c.bf16 %v1136, %v1134
        %v1159 = vpack.c.bf16 %v1137, %v1135
        %v1160 = vpack.c.bf16 %v1140, %v1138
        %v1161 = vpack.c.bf16 %v1141, %v1139
        %v1162 = vpack.c.bf16 %v1144, %v1142
        %v1163 = vpack.c.bf16 %v1145, %v1143
        %v1164 = vpack.c.bf16 %v1148, %v1146
        %v1165 = vpack.c.bf16 %v1149, %v1147
        %v1166 = vld [vmem:[#allocation11] sm:$0xff]
        %v1167 = vld [vmem:[#allocation11 + $0x8] sm:$0xff]
        %v1168 = vld [vmem:[#allocation11 + $0x10] sm:$0xff]
        %v1169 = vld [vmem:[#allocation11 + $0x18] sm:$0xff]
        %v1170 = vld [vmem:[#allocation11 + $0x20] sm:$0xff]
        %v1171 = vld [vmem:[#allocation11 + $0x28] sm:$0xff]
        %v1172 = vld [vmem:[#allocation11 + $0x30] sm:$0xff]
        %v1173 = vld [vmem:[#allocation11 + $0x38] sm:$0xff]
        %v1174 = vld [vmem:[#allocation11 + $0x40] sm:$0xff]
        %v1175 = vld [vmem:[#allocation11 + $0x48] sm:$0xff]
        %v1176 = vld [vmem:[#allocation11 + $0x50] sm:$0xff]
        %v1177 = vld [vmem:[#allocation11 + $0x58] sm:$0xff]
        %v1178 = vld [vmem:[#allocation11 + $0x60] sm:$0xff]
        %v1179 = vld [vmem:[#allocation11 + $0x68] sm:$0xff]
        %v1180 = vld [vmem:[#allocation11 + $0x70] sm:$0xff]
        %v1181 = vld [vmem:[#allocation11 + $0x78] sm:$0xff]
        %v1182 = vld [vmem:[#allocation11 + $0x80] sm:$0xff]
        %v1183 = vld [vmem:[#allocation11 + $0x88] sm:$0xff]
        %v1184 = vld [vmem:[#allocation11 + $0x90] sm:$0xff]
        %v1185 = vld [vmem:[#allocation11 + $0x98] sm:$0xff]
        %v1186 = vld [vmem:[#allocation11 + $0xa0] sm:$0xff]
        %v1187 = vld [vmem:[#allocation11 + $0xa8] sm:$0xff]
        %v1188 = vld [vmem:[#allocation11 + $0xb0] sm:$0xff]
        %v1189 = vld [vmem:[#allocation11 + $0xb8] sm:$0xff]
        %v1190 = vld [vmem:[#allocation11 + $0xc0] sm:$0xff]
        %v1191 = vld [vmem:[#allocation11 + $0xc8] sm:$0xff]
        %v1192 = vld [vmem:[#allocation11 + $0xd0] sm:$0xff]
        %v1193 = vld [vmem:[#allocation11 + $0xd8] sm:$0xff]
        %v1194 = vld [vmem:[#allocation11 + $0xe0] sm:$0xff]
        %v1195 = vld [vmem:[#allocation11 + $0xe8] sm:$0xff]
        %v1196 = vld [vmem:[#allocation11 + $0xf0] sm:$0xff]
        %v1197 = vld [vmem:[#allocation11 + $0xf8] sm:$0xff]
        %v1198 = vld [vmem:[%s8] sm:$0x3]
        %v1200 = vlaneseq
        %v1201 = vshrl.u32 %v1200, 7
        %v1202 = vsub.s32 0, %v1201
        %v1203 = vrot.slane %v1198, %v1202
        %v1204 = vlaneseq
        %v1205 = vshrl.u32 %v1204, 7
        %v1206 = vsub.s32 1, %v1205
        %v1207 = vrot.slane %v1198, %v1206
        %v1242 = vunpack.c.l.b16 %v1166
        %v1243 = vunpack.c.h.b16 %v1166
        %v1244 = vunpack.c.l.b16 %v1167
        %v1245 = vunpack.c.h.b16 %v1167
        %v1246 = vunpack.c.l.b16 %v1168
        %v1247 = vunpack.c.h.b16 %v1168
        %v1248 = vunpack.c.l.b16 %v1169
        %v1249 = vunpack.c.h.b16 %v1169
        %v1250 = vunpack.c.l.b16 %v1170
        %v1251 = vunpack.c.h.b16 %v1170
        %v1252 = vunpack.c.l.b16 %v1171
        %v1253 = vunpack.c.h.b16 %v1171
        %v1254 = vunpack.c.l.b16 %v1172
        %v1255 = vunpack.c.h.b16 %v1172
        %v1256 = vunpack.c.l.b16 %v1173
        %v1257 = vunpack.c.h.b16 %v1173
        %v1258 = vunpack.c.l.b16 %v1174
        %v1259 = vunpack.c.h.b16 %v1174
        %v1260 = vunpack.c.l.b16 %v1175
        %v1261 = vunpack.c.h.b16 %v1175
        %v1262 = vunpack.c.l.b16 %v1176
        %v1263 = vunpack.c.h.b16 %v1176
        %v1264 = vunpack.c.l.b16 %v1177
        %v1265 = vunpack.c.h.b16 %v1177
        %v1266 = vunpack.c.l.b16 %v1178
        %v1267 = vunpack.c.h.b16 %v1178
        %v1268 = vunpack.c.l.b16 %v1179
        %v1269 = vunpack.c.h.b16 %v1179
        %v1270 = vunpack.c.l.b16 %v1180
        %v1271 = vunpack.c.h.b16 %v1180
        %v1272 = vunpack.c.l.b16 %v1181
        %v1273 = vunpack.c.h.b16 %v1181
        %v1274 = vunpack.c.l.b16 %v1182
        %v1275 = vunpack.c.h.b16 %v1182
        %v1276 = vunpack.c.l.b16 %v1183
        %v1277 = vunpack.c.h.b16 %v1183
        %v1278 = vunpack.c.l.b16 %v1184
        %v1279 = vunpack.c.h.b16 %v1184
        %v1280 = vunpack.c.l.b16 %v1185
        %v1281 = vunpack.c.h.b16 %v1185
        %v1282 = vunpack.c.l.b16 %v1186
        %v1283 = vunpack.c.h.b16 %v1186
        %v1284 = vunpack.c.l.b16 %v1187
        %v1285 = vunpack.c.h.b16 %v1187
        %v1286 = vunpack.c.l.b16 %v1188
        %v1287 = vunpack.c.h.b16 %v1188
        %v1288 = vunpack.c.l.b16 %v1189
        %v1289 = vunpack.c.h.b16 %v1189
        %v1290 = vunpack.c.l.b16 %v1190
        %v1291 = vunpack.c.h.b16 %v1190
        %v1292 = vunpack.c.l.b16 %v1191
        %v1293 = vunpack.c.h.b16 %v1191
        %v1294 = vunpack.c.l.b16 %v1192
        %v1295 = vunpack.c.h.b16 %v1192
        %v1296 = vunpack.c.l.b16 %v1193
        %v1297 = vunpack.c.h.b16 %v1193
        %v1298 = vunpack.c.l.b16 %v1194
        %v1299 = vunpack.c.h.b16 %v1194
        %v1300 = vunpack.c.l.b16 %v1195
        %v1301 = vunpack.c.h.b16 %v1195
        %v1302 = vunpack.c.l.b16 %v1196
        %v1303 = vunpack.c.h.b16 %v1196
        %v1304 = vunpack.c.l.b16 %v1197
        %v1305 = vunpack.c.h.b16 %v1197
        %v1306 = vpack.c.b16 %v1244, %v1242
        %v1307 = vpack.c.b16 %v1245, %v1243
        %v1308 = vpack.c.b16 %v1248, %v1246
        %v1309 = vpack.c.b16 %v1249, %v1247
        %v1310 = vpack.c.b16 %v1252, %v1250
        %v1311 = vpack.c.b16 %v1253, %v1251
        %v1312 = vpack.c.b16 %v1256, %v1254
        %v1313 = vpack.c.b16 %v1257, %v1255
        %v1314 = vpack.c.b16 %v1260, %v1258
        %v1315 = vpack.c.b16 %v1261, %v1259
        %v1316 = vpack.c.b16 %v1264, %v1262
        %v1317 = vpack.c.b16 %v1265, %v1263
        %v1318 = vpack.c.b16 %v1268, %v1266
        %v1319 = vpack.c.b16 %v1269, %v1267
        %v1320 = vpack.c.b16 %v1272, %v1270
        %v1321 = vpack.c.b16 %v1273, %v1271
        %v1322 = vpack.c.b16 %v1276, %v1274
        %v1323 = vpack.c.b16 %v1277, %v1275
        %v1324 = vpack.c.b16 %v1280, %v1278
        %v1325 = vpack.c.b16 %v1281, %v1279
        %v1326 = vpack.c.b16 %v1284, %v1282
        %v1327 = vpack.c.b16 %v1285, %v1283
        %v1328 = vpack.c.b16 %v1288, %v1286
        %v1329 = vpack.c.b16 %v1289, %v1287
        %v1330 = vpack.c.b16 %v1292, %v1290
        %v1331 = vpack.c.b16 %v1293, %v1291
        %v1332 = vpack.c.b16 %v1296, %v1294
        %v1333 = vpack.c.b16 %v1297, %v1295
        %v1334 = vpack.c.b16 %v1300, %v1298
        %v1335 = vpack.c.b16 %v1301, %v1299
        %v1336 = vpack.c.b16 %v1304, %v1302
        %v1337 = vpack.c.b16 %v1305, %v1303
        %1370 = vmatprep.subr.bf16.mxu0 %v1307
        %1371 = vmatpush1.bf16.msra.mxu0 %v1306
        %1372 = vmatprep.subr.bf16.mxu0 %v1309
        %1373 = vmatpush1.bf16.msra.mxu0 %v1308
        %1374 = vmatprep.subr.bf16.mxu0 %v1311
        %1375 = vmatpush1.bf16.msra.mxu0 %v1310
        %1376 = vmatprep.subr.bf16.mxu0 %v1313
        %1377 = vmatpush1.bf16.msra.mxu0 %v1312
        %1378 = vmatprep.subr.bf16.mxu0 %v1315
        %1379 = vmatpush1.bf16.msra.mxu0 %v1314
        %1380 = vmatprep.subr.bf16.mxu0 %v1317
        %1381 = vmatpush1.bf16.msra.mxu0 %v1316
        %1382 = vmatprep.subr.bf16.mxu0 %v1319
        %1383 = vmatpush1.bf16.msra.mxu0 %v1318
        %1384 = vmatprep.subr.bf16.mxu0 %v1321
        %1385 = vmatpush1.bf16.msra.mxu0 %v1320
        %1386 = vmatprep.subr.bf16.mxu0 %v1323
        %1387 = vmatpush1.bf16.msra.mxu0 %v1322
        %1388 = vmatprep.subr.bf16.mxu0 %v1325
        %1389 = vmatpush1.bf16.msra.mxu0 %v1324
        %1390 = vmatprep.subr.bf16.mxu0 %v1327
        %1391 = vmatpush1.bf16.msra.mxu0 %v1326
        %1392 = vmatprep.subr.bf16.mxu0 %v1329
        %1393 = vmatpush1.bf16.msra.mxu0 %v1328
        %1394 = vmatprep.subr.bf16.mxu0 %v1331
        %1395 = vmatpush1.bf16.msra.mxu0 %v1330
        %1396 = vmatprep.subr.bf16.mxu0 %v1333
        %1397 = vmatpush1.bf16.msra.mxu0 %v1332
        %1398 = vmatprep.subr.bf16.mxu0 %v1335
        %1399 = vmatpush1.bf16.msra.mxu0 %v1334
        %1400 = vmatprep.subr.bf16.mxu0 %v1337
        %1401 = vmatpush1.bf16.msra.mxu0 %v1336
        %1402 = vmatprep.mubr.bf16.mxu0 %v1151
        %1403 = vmatmul.mubr.bf16.gmra.mrb[0].mxu0 %v1150
        %v1404 = vpop.f32.mrb[0].mxu0
        %v1405 = vadd.f32 %v1203, %v1404
        %v1406 = vpop.f32.mrb[0].mxu0
        %v1407 = vadd.f32 %v1207, %v1406
        %v1408 = vpop.f32.mrb[0].mxu0
        %v1409 = vadd.f32 %v1203, %v1408
        %v1410 = vpop.f32.mrb[0].mxu0
        %v1411 = vadd.f32 %v1207, %v1410
        %1412 = vmatprep.mubr.bf16.mxu0 %v1153
        %1413 = vmatmul.mubr.bf16.gmra.mrb[0].mxu0 %v1152
        %v1414 = vpop.f32.mrb[0].mxu0
        %v1415 = vadd.f32 %v1203, %v1414
        %v1416 = vpop.f32.mrb[0].mxu0
        %v1417 = vadd.f32 %v1207, %v1416
        %v1418 = vpop.f32.mrb[0].mxu0
        %v1419 = vadd.f32 %v1203, %v1418
        %v1420 = vpop.f32.mrb[0].mxu0
        %v1421 = vadd.f32 %v1207, %v1420
        %1422 = vmatprep.mubr.bf16.mxu0 %v1155
        %1423 = vmatmul.mubr.bf16.gmra.mrb[0].mxu0 %v1154
        %v1424 = vpop.f32.mrb[0].mxu0
        %v1425 = vadd.f32 %v1203, %v1424
        %v1426 = vpop.f32.mrb[0].mxu0
        %v1427 = vadd.f32 %v1207, %v1426
        %v1428 = vpop.f32.mrb[0].mxu0
        %v1429 = vadd.f32 %v1203, %v1428
        %v1430 = vpop.f32.mrb[0].mxu0
        %v1431 = vadd.f32 %v1207, %v1430
        %1432 = vmatprep.mubr.bf16.mxu0 %v1157
        %1433 = vmatmul.mubr.bf16.gmra.mrb[0].mxu0 %v1156
        %v1434 = vpop.f32.mrb[0].mxu0
        %v1435 = vadd.f32 %v1203, %v1434
        %v1436 = vpop.f32.mrb[0].mxu0
        %v1437 = vadd.f32 %v1207, %v1436
        %v1438 = vpop.f32.mrb[0].mxu0
        %v1439 = vadd.f32 %v1203, %v1438
        %v1440 = vpop.f32.mrb[0].mxu0
        %v1441 = vadd.f32 %v1207, %v1440
        %1442 = vmatprep.mubr.bf16.mxu0 %v1159
        %1443 = vmatmul.mubr.bf16.gmra.mrb[0].mxu0 %v1158
        %v1444 = vpop.f32.mrb[0].mxu0
        %v1445 = vadd.f32 %v1203, %v1444
        %v1446 = vpop.f32.mrb[0].mxu0
        %v1447 = vadd.f32 %v1207, %v1446
        %v1448 = vpop.f32.mrb[0].mxu0
        %v1449 = vadd.f32 %v1203, %v1448
        %v1450 = vpop.f32.mrb[0].mxu0
        %v1451 = vadd.f32 %v1207, %v1450
        %1452 = vmatprep.mubr.bf16.mxu0 %v1161
        %1453 = vmatmul.mubr.bf16.gmra.mrb[0].mxu0 %v1160
        %v1454 = vpop.f32.mrb[0].mxu0
        %v1455 = vadd.f32 %v1203, %v1454
        %v1456 = vpop.f32.mrb[0].mxu0
        %v1457 = vadd.f32 %v1207, %v1456
        %v1458 = vpop.f32.mrb[0].mxu0
        %v1459 = vadd.f32 %v1203, %v1458
        %v1460 = vpop.f32.mrb[0].mxu0
        %v1461 = vadd.f32 %v1207, %v1460
        %1462 = vmatprep.mubr.bf16.mxu0 %v1163
        %1463 = vmatmul.mubr.bf16.gmra.mrb[0].mxu0 %v1162
        %v1464 = vpop.f32.mrb[0].mxu0
        %v1465 = vadd.f32 %v1203, %v1464
        %v1466 = vpop.f32.mrb[0].mxu0
        %v1467 = vadd.f32 %v1207, %v1466
        %v1468 = vpop.f32.mrb[0].mxu0
        %v1469 = vadd.f32 %v1203, %v1468
        %v1470 = vpop.f32.mrb[0].mxu0
        %v1471 = vadd.f32 %v1207, %v1470
        %1472 = vmatprep.mubr.bf16.mxu0 %v1165
        %1473 = vmatmul.mubr.bf16.gmra.mrb[0].mxu0 %v1164
        %v1474 = vpop.f32.mrb[0].mxu0
        %v1475 = vadd.f32 %v1203, %v1474
        %v1476 = vpop.f32.mrb[0].mxu0
        %v1477 = vadd.f32 %v1207, %v1476
        %v1478 = vpop.f32.mrb[0].mxu0
        %v1479 = vadd.f32 %v1203, %v1478
        %v1480 = vpop.f32.mrb[0].mxu0
        %v1481 = vadd.f32 %v1207, %v1480
        %1482 = vdwg.mxu0
        %v1483 = vmax.f32 %v1405, 0.0
        %v1484 = vmax.f32 %v1407, 0.0
        %v1485 = vmax.f32 %v1409, 0.0
        %v1486 = vmax.f32 %v1411, 0.0
        %v1487 = vmax.f32 %v1415, 0.0
        %v1488 = vmax.f32 %v1417, 0.0
        %v1489 = vmax.f32 %v1419, 0.0
        %v1490 = vmax.f32 %v1421, 0.0
        %v1491 = vmax.f32 %v1425, 0.0
        %v1492 = vmax.f32 %v1427, 0.0
        %v1493 = vmax.f32 %v1429, 0.0
        %v1494 = vmax.f32 %v1431, 0.0
        %v1495 = vmax.f32 %v1435, 0.0
        %v1496 = vmax.f32 %v1437, 0.0
        %v1497 = vmax.f32 %v1439, 0.0
        %v1498 = vmax.f32 %v1441, 0.0
        %v1499 = vmax.f32 %v1445, 0.0
        %v1500 = vmax.f32 %v1447, 0.0
        %v1501 = vmax.f32 %v1449, 0.0
        %v1502 = vmax.f32 %v1451, 0.0
        %v1503 = vmax.f32 %v1455, 0.0
        %v1504 = vmax.f32 %v1457, 0.0
        %v1505 = vmax.f32 %v1459, 0.0
        %v1506 = vmax.f32 %v1461, 0.0
        %v1507 = vmax.f32 %v1465, 0.0
        %v1508 = vmax.f32 %v1467, 0.0
        %v1509 = vmax.f32 %v1469, 0.0
        %v1510 = vmax.f32 %v1471, 0.0
        %v1511 = vmax.f32 %v1475, 0.0
        %v1512 = vmax.f32 %v1477, 0.0
        %v1513 = vmax.f32 %v1479, 0.0
        %v1514 = vmax.f32 %v1481, 0.0
        %v1515 = vpack.c.bf16 %v1485, %v1483
        %v1516 = vpack.c.bf16 %v1486, %v1484
        %v1517 = vpack.c.bf16 %v1489, %v1487
        %v1518 = vpack.c.bf16 %v1490, %v1488
        %v1519 = vpack.c.bf16 %v1493, %v1491
        %v1520 = vpack.c.bf16 %v1494, %v1492
        %v1521 = vpack.c.bf16 %v1497, %v1495
        %v1522 = vpack.c.bf16 %v1498, %v1496
        %v1523 = vpack.c.bf16 %v1501, %v1499
        %v1524 = vpack.c.bf16 %v1502, %v1500
        %v1525 = vpack.c.bf16 %v1505, %v1503
        %v1526 = vpack.c.bf16 %v1506, %v1504
        %v1527 = vpack.c.bf16 %v1509, %v1507
        %v1528 = vpack.c.bf16 %v1510, %v1508
        %v1529 = vpack.c.bf16 %v1513, %v1511
        %v1530 = vpack.c.bf16 %v1514, %v1512
        %v1531 = vld [vmem:[%s9] sm:$0x3]
        %v1532 = vld [vmem:[#allocation2] sm:$0x1]
        %1534 = vset.pattern.permute.xlu0 0
        %1535 = vperm.xlu0 %1534, %v1532
        %v1536 = vpop.permute.xlu0 %1535
        %v1538 = vlaneseq
        %v1539 = vshrl.u32 %v1538, 7
        %v1540 = vsub.s32 0, %v1539
        %v1541 = vrot.slane %v1536, %v1540
        %v1544 = vunpack.c.l.s4 1966171168
        %v1545 = vunpack.c.0.s8 %v1544
        %v1546 = vlaneseq
        %v1547 = vshrl.u32 %v1546, 7
        %v1548 = vsub.s32 %v1545, %v1547
        %v1549 = vrot.slane %v1531, %v1548
        %v1550 = vcombine.high %v1549, %v1549
        %v1552 = vunpack.c.l.s4 1966171168
        %v1553 = vunpack.c.0.s8 %v1552
        %v1554 = vlaneseq
        %v1555 = vshrl.u32 %v1554, 7
        %v1556 = vsub.s32 %v1553, %v1555
        %v1557 = vrot.slane %v1549, %v1556
        %v1559 = vunpack.c.l.s4 1966171168
        %v1560 = vunpack.c.0.s8 %v1559
        %v1561 = vlaneseq
        %v1562 = vshrl.u32 %v1561, 7
        %v1563 = vsub.s32 %v1560, %v1562
        %v1564 = vrot.slane %v1550, %v1563
        %1567 = vmatprep.subr.bf16.mxu0 %v1516
        %1568 = vmatpush1.bf16.xpose.msra.mxu0 %v1515
        %1569 = vmatprep.subr.bf16.mxu0 %v1518
        %1570 = vmatpush1.bf16.xpose.msra.mxu0 %v1517
        %1571 = vmatprep.subr.bf16.mxu0 %v1520
        %1572 = vmatpush1.bf16.xpose.msra.mxu0 %v1519
        %1573 = vmatprep.subr.bf16.mxu0 %v1522
        %1574 = vmatpush1.bf16.xpose.msra.mxu0 %v1521
        %1575 = vmatprep.subr.bf16.mxu0 %v1524
        %1576 = vmatpush1.bf16.xpose.msra.mxu0 %v1523
        %1577 = vmatprep.subr.bf16.mxu0 %v1526
        %1578 = vmatpush1.bf16.xpose.msra.mxu0 %v1525
        %1579 = vmatprep.subr.bf16.mxu0 %v1528
        %1580 = vmatpush1.bf16.xpose.msra.mxu0 %v1527
        %1581 = vmatprep.subr.bf16.mxu0 %v1530
        %1582 = vmatpush1.bf16.xpose.msra.mxu0 %v1529
        %1583 = vmatprep.subr.bf16.mxu0 0
        %1584 = vmatpush1.bf16.xpose.msra.mxu0 0
        %1585 = vmatprep.subr.bf16.mxu0 0
        %1586 = vmatpush1.bf16.xpose.msra.mxu0 0
        %1587 = vmatprep.subr.bf16.mxu0 0
        %1588 = vmatpush1.bf16.xpose.msra.mxu0 0
        %1589 = vmatprep.subr.bf16.mxu0 0
        %1590 = vmatpush1.bf16.xpose.msra.mxu0 0
        %1591 = vmatprep.subr.bf16.mxu0 0
        %1592 = vmatpush1.bf16.xpose.msra.mxu0 0
        %1593 = vmatprep.subr.bf16.mxu0 0
        %1594 = vmatpush1.bf16.xpose.msra.mxu0 0
        %1595 = vmatprep.subr.bf16.mxu0 0
        %1596 = vmatpush1.bf16.xpose.msra.mxu0 0
        %1597 = vmatprep.subr.bf16.mxu0 0
        %1598 = vmatpush1.bf16.xpose.msra.mxu0 0
        %1599 = vmatprep.mubr.bf16.mxu0 %v1564
        %1600 = vmatmul.mubr.bf16.gmra.mrb[0].mxu0 %v1557
        %v1601 = vpop.f32.mrb[0].mxu0
        %v1602 = vadd.f32 %v1541, %v1601
        %v1603 = vpop.f32.mrb[0].mxu0
        %v1604 = vpop.f32.mrb[0].mxu0
        %v1605 = vpop.f32.mrb[0].mxu0
        %1606 = vdwg.mxu0
        %v1608 = vrot.slane %v1602, 7
        %1609 = vrot.lane.b32.xlu0 %v1608, 112
        %v1610 = vpop.permute.xlu0 %1609
        %v1612 = vrot.slane %v1602, 6
        %1613 = vrot.lane.b32.xlu0 %v1612, 96
        %v1614 = vpop.permute.xlu0 %1613
        %v1616 = vrot.slane %v1602, 5
        %1617 = vrot.lane.b32.xlu0 %v1616, 80
        %v1618 = vpop.permute.xlu0 %1617
        %v1620 = vrot.slane %v1602, 4
        %1621 = vrot.lane.b32.xlu0 %v1620, 64
        %v1622 = vpop.permute.xlu0 %1621
        %v1624 = vrot.slane %v1602, 3
        %1625 = vrot.lane.b32.xlu0 %v1624, 48
        %v1626 = vpop.permute.xlu0 %1625
        %v1628 = vrot.slane %v1602, 2
        %1629 = vrot.lane.b32.xlu0 %v1628, 32
        %v1630 = vpop.permute.xlu0 %1629
        %v1632 = vrot.slane %v1602, 1
        %1633 = vrot.lane.b32.xlu0 %v1632, 16
        %v1634 = vpop.permute.xlu0 %1633
        %vm1636 = vcmask 1040384
        %v1637 = vsel %vm1636, %v1602, %v1610
        %vm1638 = vcmask 1041408
        %v1639 = vsel %vm1638, %v1637, %v1614
        %vm1640 = vcmask 1042432
        %v1641 = vsel %vm1640, %v1639, %v1618
        %vm1642 = vcmask 1043456
        %v1643 = vsel %vm1642, %v1641, %v1622
        %vm1644 = vcmask 1044480
        %v1645 = vsel %vm1644, %v1643, %v1626
        %vm1646 = vcmask 1045504
        %v1647 = vsel %vm1646, %v1645, %v1630
        %vm1648 = vcmask 1046528
        %v1649 = vsel %vm1648, %v1647, %v1634
        %v1650 = vld [vmem:[%s629] sm:$0xff]
        %1652 = vset.pattern.permute.xlu0 0
        %1653 = vperm.xlu0 %1652, %v1650
        %v1654 = vpop.permute.xlu0 %1653
        %v1656 = vadd.f32 %v1649, %v1654
        %v1657 = vld [vmem:[%s635] sm:$0x1]
        %v1659 = vlaneseq
        %v1660 = vshrl.u32 %v1659, 7
        %v1661 = vsub.s32 0, %v1660
        %v1662 = vrot.slane %v1657, %v1661
        %v1664 = vadd.f32 %v1656, %v1662
        %v1665 = vmul.f32 %v1664, 0.33333334
        %vm1666 = vcmask 130048
        %1667 = vst.msk [vmem:[%s611] sm:$0xff] %vm1666, %v1665
        %s1668 = sand.u32 %s338, 1
        %s1669 = scalar_lea.sflag [#allocation5], %s1668
        %s1670 = sand.u32 %s338, 1
        %s1671 = smul.addr %s1670, 8
        %s1672 = scalar_lea.vmem [#allocation12], %s1671
        // Predicated region
        $region85: #{tpu_custom_call.1} parent=63 // pred_check
          %p1673 = pneg %p348
        $region86: #{tpu_custom_call.1} parent=63 // pred_check_branch
          %1675 = sbr.rel (%p1673) target = $region88
        $region87: #{tpu_custom_call.1} parent=63 // pred_region
          %s1677 = ssub.s32 128, 128
          %1678 = vsyncadd %s1669, %s1677
          %s1679 = sadd.s32 %s41, %s40
          %s1680 = smul.addr %s39, 2
          %s1681 = sadd.s32 %s1679, %s1680
          %s1682 = smul.addr %s1681, 128
          %s1683 = scalar_lea.hbm %s11, %s1682
          %s1685 = sshll.u32 %s1672, 4
          %s1686 = int_to_ptr.vmem [resolvable:$true] %s1685
          %1688 = dma.vmem_to_hbm [thread:$0]  %s1686, 128, %s1683, %s1669
        $region88: #{tpu_custom_call.1} parent=63 // pred_fallthru
          _
      $region64: #{tpu_custom_call.1} parent=5 // pred_fallthru
        _
      %p1689 = scmp.le.s32.totalorder 2, %s29
      // Predicated region
      $region89: #{tpu_custom_call.1} parent=5 // pred_check
        %p1690 = pneg %p1689
      $region90: #{tpu_custom_call.1} parent=5 // pred_check_branch
        %1692 = sbr.rel (%p1690) target = $region92
      $region91: #{tpu_custom_call.1} parent=5 // pred_region
        %s1693 = ssub.s32 %s29, 2
        // Predicated region
        $region93: #{tpu_custom_call.1} parent=91 // pred_check
          %p1694 = pneg %p354
        $region94: #{tpu_custom_call.1} parent=91 // pred_check_branch
          %1696 = sbr.rel (%p1694) target = $region96
        $region95: #{tpu_custom_call.1} parent=91 // pred_region
          %s1697 = sand.u32 %s339, 1
          %s1698 = scalar_lea.sflag [#allocation5], %s1697
          %s1699 = sand.u32 %s339, 1
          %s1700 = smul.addr %s1699, 8
          %s1701 = scalar_lea.vmem [#allocation12], %s1700
          %1702 = dma.done %s1698, 128
        $region96: #{tpu_custom_call.1} parent=91 // pred_fallthru
          _
      $region92: #{tpu_custom_call.1} parent=5 // pred_fallthru
        _
    $region6: #{tpu_custom_call.1} parent=1 // loop_footer
      %s33 = sadd.s32 1, %s29
    $region7: #{tpu_custom_call.1} parent=1 // loop_footer_branch
      %28 = sbr.rel target = $region3
    $region8: #{tpu_custom_call.1} parent=1 // loop_exit
      _
    %1703 = vsyncpa [#allocation4], 1
    %s1704 = scalar_lea.sflag [#allocation4], 1
    %1705 = vsyncpa %s1704, 1
    %1706 = vsyncpa [#allocation7], 1
    %s1707 = scalar_lea.sflag [#allocation7], 1
    %1708 = vsyncpa %s1707, 1
    %1709 = vsyncpa [#allocation10], 1
    %1710 = vsyncpa [#allocation5], 1
    %s1711 = scalar_lea.sflag [#allocation5], 1
    %1712 = vsyncpa %s1711, 1

</llo_original>
